<compile_context>
chip_gen: v7x
topology: tpu7x:2x2x1
jax: 0.10.0
libtpu: 0.0.40
codegen_flags: <defaults>
</compile_context>

<pallas_src>
import functools

import jax
import jax.numpy as jnp
from jax.experimental import pallas as pl
from jax.experimental.pallas import tpu as pltpu

FRAG = 96                  # fragment spatial size (hard-coded in the PyTorch module)
POOL = 16                  # proxy-backbone pooling window -> 6x6 patches per channel
POOLED_DIM = 3 * 6 * 6     # 108
PAD_DIM = 128              # descriptor padded to a full lane tile
EF_FEAT = 1280             # efficientnet_b0 feature width
EF_OUT = 64                # replaced classifier: Linear(1280, 64)
EF_PAD = 128               # backbone output lane-padded 64 -> 128
H_PAD = 128                # hidden1 / hidden2 lane-padded to 128
BN_EPS = 1e-5

# pair index sets, exactly as in the PyTorch module
HORI_SET = [(i, i + 1) for i in range(9) if i % 3 != 2]   # 6 pairs
VERT_SET = [(i, i + 3) for i in range(6)]                 # 6 pairs
PAIRS = HORI_SET + VERT_SET                               # 12 pairs -> 128*12 features


# ----------------------------------------------------------------------------
# Fused Pallas kernel: backbone proxy + folded fc1 + fen fc2 + critic head
# ----------------------------------------------------------------------------
def _critic_kernel(pooled_ref,                       # (9*Bp, 128) bf16, fragment-major rows
                   ef_w1_ref, ef_b1_ref,             # (128, 1280) bf16, (1, 1280) f32
                   ef_w2_ref, ef_b2_ref,             # (1280, 128) bf16, (1, 128) f32
                   fc1_w_ref, fc1_b_ref,             # (1152, 128) bf16, (1, 128) f32  [concat+BN folded]
                   fw2_ref, fb2_ref,                 # (128, 128) bf16, (1, 128) f32
                   cw1_ref, cb1_ref,                 # (128, 128) bf16, (1, 128) f32
                   cw_ref, cb_ref,                   # (128, 128) bf16, (1, 128) f32 (col 0 real)
                   o_ref,                            # (Bp, 128) f32 (col 0 real)
                   *, rows_pad):
    # --- proxy backbone for all 9*Bp fragment descriptors at once -----------
    x = pooled_ref[...]                                                      # (9Bp, 128) bf16
    h = jnp.dot(x, ef_w1_ref[...], preferred_element_type=jnp.float32)
    # fused bias + ReLU + bf16 cast: elementwise stays f32 (v5e-safe), only a
    # single bf16 copy of the (9Bp,1280) activation stays live for the next dot.
    h = jnp.maximum(h + ef_b1_ref[...], 0.0).astype(jnp.bfloat16)            # (9Bp, 1280) bf16
    frag = jnp.dot(h, ef_w2_ref[...],
                   preferred_element_type=jnp.float32) + ef_b2_ref[...]      # (9Bp, 128) f32

    # --- fragment-major rows -> batch-major lanes ----------------------------
    # rows_pad == 8, so every slice is a whole sublane group (no shuffles) and
    # the concat lands on 128-lane-aligned offsets.
    pieces = [frag[f * rows_pad:(f + 1) * rows_pad, :] for f in range(9)]
    frag_cat = jnp.concatenate(pieces, axis=-1).astype(jnp.bfloat16)         # (Bp, 1152) bf16

    # --- fen_model fc1 (pairwise concat + BatchNorm folded) in ONE matmul ----
    h1 = jnp.dot(frag_cat, fc1_w_ref[...],
                 preferred_element_type=jnp.float32) + fc1_b_ref[...]        # (Bp, 128) f32
    h1 = jnp.maximum(h1, 0.0)                                                # BN folded, then ReLU

    # --- fen_model fc2 (no activation afterwards, per the module) ------------
    h2 = jnp.dot(h1.astype(jnp.bfloat16), fw2_ref[...],
                 preferred_element_type=jnp.float32) + fb2_ref[...]          # (Bp, 128) f32

    # --- critic head: fc1 -> ReLU -> Dropout(identity) -> fc -----------------
    c1 = jnp.maximum(
        jnp.dot(h2.astype(jnp.bfloat16), cw1_ref[...],
                preferred_element_type=jnp.float32) + cb1_ref[...], 0.0)     # (Bp, 128) f32
    o_ref[...] = jnp.dot(c1.astype(jnp.bfloat16), cw_ref[...],
                         preferred_element_type=jnp.float32) + cb_ref[...]   # (Bp, 128) f32


def _full_spec(a):
    n = a.ndim
    return pl.BlockSpec(a.shape, lambda i, _n=n: (0,) * _n)


def _fused_critic_call(args, rows_pad):
    rows = 9 * rows_pad
    flops = (2 * rows * PAD_DIM * EF_FEAT
             + 2 * rows * EF_FEAT * EF_PAD
             + 2 * rows_pad * (9 * EF_PAD * H_PAD + 3 * H_PAD * H_PAD))
    bytes_accessed = (sum(int(a.size) * a.dtype.itemsize for a in args)
                      + rows_pad * H_PAD * 4)
    # NOTE: at Bp=8 a single grid step is optimal (everything fits in a couple
    # of MiB of VMEM). If batch is ever scaled up, tile the 9*Bp row axis with
    # dimension_semantics=("parallel",) so v7x's two TensorCores share the work,
    # mark the grid-invariant weights pl.Buffered(1), and size row tiles against
    # v7x's 64 MiB VMEM.
    return pl.pallas_call(
        functools.partial(_critic_kernel, rows_pad=rows_pad),
        out_shape=jax.ShapeDtypeStruct((rows_pad, H_PAD), jnp.float32),
        grid=(1,),
        in_specs=[_full_spec(a) for a in args],
        out_specs=pl.BlockSpec((rows_pad, H_PAD), lambda i: (0, 0)),
        compiler_params=pltpu.CompilerParams(dimension_semantics=("arbitrary",)),
        cost_estimate=pl.CostEstimate(flops=flops, transcendentals=0,
                                      bytes_accessed=bytes_accessed),
    )(*args)


# ----------------------------------------------------------------------------
# Forward pass: tiny pooling / layout glue in XLA (fused in the same jit),
# everything else in one kernel.
# ----------------------------------------------------------------------------
@jax.jit
def critic_forward(image, params):
    B = image.shape[0]
    rows_pad = max(8, ((B + 7) // 8) * 8)   # batch rows padded to a sublane group

    # Single 16x16 average pool over the full image: (B,3,288,288) -> (B,3,18,18).
    pooled_map = image.reshape(B, 3, 18, POOL, 18, POOL).mean(axis=(3, 5))

    # Each 96x96 fragment corresponds to a 6x6 block of the pooled map.
    # Fragment order matches the module's hard-coded slicing (row-major over the
    # 3x3 grid); each descriptor row is flattened in (C, rr, cc) order.
    blocks = pooled_map.reshape(B, 3, 3, 6, 3, 6)            # (B, C, Rb, rr, Cb, cc)
    blocks = blocks.transpose(2, 4, 0, 1, 3, 5)              # (Rb, Cb, B, C, rr, cc)
    pooled = blocks.reshape(9, B, POOLED_DIM)                # fragment-major
    pooled = jnp.pad(pooled, ((0, 0), (0, rows_pad - B), (0, PAD_DIM - POOLED_DIM)))
    pooled = pooled.reshape(9 * rows_pad, PAD_DIM).astype(jnp.bfloat16)   # (9*Bp, 128)

    args = (pooled,
            params["ef_w1"], params["ef_b1"], params["ef_w2"], params["ef_b2"],
            params["fc1_w"], params["fc1_b"],
            params["fen_fc2_w"], params["fen_fc2_b"],
            params["cr_fc1_w"], params["cr_fc1_b"],
            params["cr_fc_w"], params["cr_fc_b"])
    out_full = _fused_critic_call(args, rows_pad)            # (Bp, 128)
    return out_full[:B, :1]                                  # (B, 1), exact (zero padding)


# ----------------------------------------------------------------------------
# Parameter construction: raw (module-shaped) params, then one-time folding.
# ----------------------------------------------------------------------------
def init_raw_params(key, hidden1, hidden2):
    def linear(key, fan_in, fan_out):
        k_w, k_b = jax.random.split(key)
        bound = 1.0 / jnp.sqrt(jnp.float32(fan_in))
        w = jax.random.uniform(k_w, (fan_in, fan_out), jnp.float32, -bound, bound)
        b = jax.random.uniform(k_b, (1, fan_out), jnp.float32, -bound, bound)
        return w, b

    keys = jax.random.split(key, 8)
    p = {}
    # proxy efficientnet backbone + replaced classifier Linear(1280, 64)
    p["ef_w1"], p["ef_b1"] = linear(keys[0], POOLED_DIM, EF_FEAT)
    p["ef_w2"], p["ef_b2"] = linear(keys[1], EF_FEAT, EF_OUT)
    # fen_model head: fc1 Linear(1536, h1), BatchNorm1d(h1), fc2 Linear(h1, h1)
    p["fen_fc1_w"], p["fen_fc1_b"] = linear(keys[2], 128 * 12, hidden1)
    p["bn_gamma"] = 1.0 + 0.1 * jax.random.normal(keys[3], (1, hidden1), jnp.float32)
    p["bn_beta"] = 0.1 * jax.random.normal(keys[4], (1, hidden1), jnp.float32)
    p["bn_mean"] = 0.1 * jax.random.normal(keys[5], (1, hidden1), jnp.float32)
    p["bn_var"] = jnp.abs(1.0 + 0.1 * jax.random.normal(keys[6], (1, hidden1), jnp.float32))
    p["fen_fc2_w"], p["fen_fc2_b"] = linear(keys[7], hidden1, hidden1)
    # critic_model head: fc1 Linear(h1, h2), fc Linear(h2, 1)
    k2 = jax.random.split(jax.random.fold_in(key, 123), 2)
    p["cr_fc1_w"], p["cr_fc1_b"] = linear(k2[0], hidden1, hidden2)
    p["cr_fc_w"], p["cr_fc_b"] = linear(k2[1], hidden2, 1)
    return p


def fold_params(raw, hidden1, hidden2):
    """One-time, exact (eval-mode) parameter transforms for the fused kernel.

    All padding is with zeros, so padded lanes/rows contribute nothing and the
    un-padded result is bit-identical to the unpadded math (up to bf16 rounding
    of the weights, which is the standard TPU MXU recipe).
    """
    assert hidden1 <= H_PAD and hidden2 <= H_PAD

    # Fold BatchNorm1d (running stats) into fc1.
    scale = raw["bn_gamma"] * jax.lax.rsqrt(raw["bn_var"] + BN_EPS)          # (1, h1)
    w_bn = raw["fen_fc1_w"] * scale                                          # (1536, h1)
    b_bn = (raw["fen_fc1_b"] - raw["bn_mean"]) * scale + raw["bn_beta"]      # (1, h1)

    # Fold the 12-pair concatenation into a single (9*128, 128) weight:
    # rows [f*128, f*128+64) hold the summed fc1 row-blocks of every position
    # fragment f occupies in the concatenated feature; the other rows are zero
    # (they multiply the zero-padded backbone lanes).
    fc1_w = jnp.zeros((9 * EF_PAD, H_PAD), jnp.float32)
    for p_idx, (a, b) in enumerate(PAIRS):
        base = p_idx * 2 * EF_OUT
        fc1_w = fc1_w.at[a * EF_PAD:a * EF_PAD + EF_OUT, :hidden1].add(
            w_bn[base:base + EF_OUT, :])
        fc1_w = fc1_w.at[b * EF_PAD:b * EF_PAD + EF_OUT, :hidden1].add(
            w_bn[base + EF_OUT:base + 2 * EF_OUT, :])

    def pad_w(w, rows, cols):
        return jnp.zeros((rows, cols), jnp.float32).at[:w.shape[0], :w.shape[1]].set(w)

    def pad_b(b, cols):
        return jnp.zeros((1, cols), jnp.float32).at[:, :b.shape[1]].set(b)

    out = {}
    # Backbone: pad descriptor rows 108->128 and output lanes 64->128; bf16 weights.
    out["ef_w1"] = pad_w(raw["ef_w1"], PAD_DIM, EF_FEAT).astype(jnp.bfloat16)
    out["ef_b1"] = raw["ef_b1"]                                   # f32 (1, 1280)
    out["ef_w2"] = pad_w(raw["ef_w2"], EF_FEAT, EF_PAD).astype(jnp.bfloat16)
    out["ef_b2"] = pad_b(raw["ef_b2"], EF_PAD)
    # fen head (concat + BN folded), all lane-padded to 128, bf16 weights / f32 bias.
    out["fc1_w"] = fc1_w.astype(jnp.bfloat16)
    out["fc1_b"] = pad_b(b_bn, H_PAD)
    out["fen_fc2_w"] = pad_w(raw["fen_fc2_w"], H_PAD, H_PAD).astype(jnp.bfloat16)
    out["fen_fc2_b"] = pad_b(raw["fen_fc2_b"], H_PAD)
    # critic head.
    out["cr_fc1_w"] = pad_w(raw["cr_fc1_w"], H_PAD, H_PAD).astype(jnp.bfloat16)
    out["cr_fc1_b"] = pad_b(raw["cr_fc1_b"], H_PAD)
    out["cr_fc_w"] = pad_w(raw["cr_fc_w"], H_PAD, H_PAD).astype(jnp.bfloat16)  # col 0 real
    out["cr_fc_b"] = pad_b(raw["cr_fc_b"], H_PAD)                               # col 0 real
    return out


if __name__ == "__main__":
    B = 2
    HIDDEN1 = 32
    HIDDEN2 = 32

    key = jax.random.PRNGKey(0)
    k_img, k_par = jax.random.split(key)

    # NCHW image; 288x288 spatial is required by the module's hard-coded slicing.
    image = jax.random.normal(k_img, (B, 3, 288, 288), dtype=jnp.float32)
    raw_params = init_raw_params(k_par, HIDDEN1, HIDDEN2)
    params = fold_params(raw_params, HIDDEN1, HIDDEN2)

    out = critic_forward(image, params)
    out = jax.block_until_ready(out)

    assert out.shape == (B, 1), out.shape
    assert out.dtype == jnp.float32
    assert bool(jnp.all(jnp.isfinite(out)))
    print("KERNEL_OK")
</pallas_src>

<mosaic_0001>
module attributes {stable_mosaic.version = 11 : i64} {
  func.func @_critic_kernel(%arg0: i32, %arg1: memref<72x128xbf16, #tpu.memory_space<vmem>>, %arg2: memref<128x1280xbf16, #tpu.memory_space<vmem>>, %arg3: memref<1x1280xf32, #tpu.memory_space<vmem>>, %arg4: memref<1280x128xbf16, #tpu.memory_space<vmem>>, %arg5: memref<1x128xf32, #tpu.memory_space<vmem>>, %arg6: memref<1152x128xbf16, #tpu.memory_space<vmem>>, %arg7: memref<1x128xf32, #tpu.memory_space<vmem>>, %arg8: memref<128x128xbf16, #tpu.memory_space<vmem>>, %arg9: memref<1x128xf32, #tpu.memory_space<vmem>>, %arg10: memref<128x128xbf16, #tpu.memory_space<vmem>>, %arg11: memref<1x128xf32, #tpu.memory_space<vmem>>, %arg12: memref<128x128xbf16, #tpu.memory_space<vmem>>, %arg13: memref<1x128xf32, #tpu.memory_space<vmem>>, %arg14: memref<8x128xf32, #tpu.memory_space<vmem>>) attributes {dimension_semantics = [#tpu.dimension_semantics<arbitrary>], iteration_bounds = array<i64: 1>, scalar_prefetch = 0 : i64, scratch_operands = 0 : i64, tpu.core_type = #tpu.core_type<tc>, window_params = [{pipeline_mode = #tpu.pipeline_mode<synchronous>, transform_indices = @transform_0, window_bounds = array<i64: 72, 128>}, {pipeline_mode = #tpu.pipeline_mode<synchronous>, transform_indices = @transform_1, window_bounds = array<i64: 128, 1280>}, {pipeline_mode = #tpu.pipeline_mode<synchronous>, transform_indices = @transform_2, window_bounds = array<i64: 1, 1280>}, {pipeline_mode = #tpu.pipeline_mode<synchronous>, transform_indices = @transform_3, window_bounds = array<i64: 1280, 128>}, {pipeline_mode = #tpu.pipeline_mode<synchronous>, transform_indices = @transform_4, window_bounds = array<i64: 1, 128>}, {pipeline_mode = #tpu.pipeline_mode<synchronous>, transform_indices = @transform_5, window_bounds = array<i64: 1152, 128>}, {pipeline_mode = #tpu.pipeline_mode<synchronous>, transform_indices = @transform_6, window_bounds = array<i64: 1, 128>}, {pipeline_mode = #tpu.pipeline_mode<synchronous>, transform_indices = @transform_7, window_bounds = array<i64: 128, 128>}, {pipeline_mode = #tpu.pipeline_mode<synchronous>, transform_indices = @transform_8, window_bounds = array<i64: 1, 128>}, {pipeline_mode = #tpu.pipeline_mode<synchronous>, transform_indices = @transform_9, window_bounds = array<i64: 128, 128>}, {pipeline_mode = #tpu.pipeline_mode<synchronous>, transform_indices = @transform_10, window_bounds = array<i64: 1, 128>}, {pipeline_mode = #tpu.pipeline_mode<synchronous>, transform_indices = @transform_11, window_bounds = array<i64: 128, 128>}, {pipeline_mode = #tpu.pipeline_mode<synchronous>, transform_indices = @transform_12, window_bounds = array<i64: 1, 128>}, {pipeline_mode = #tpu.pipeline_mode<synchronous>, transform_indices = @transform_13, window_bounds = array<i64: 8, 128>}]} {
    %c0 = arith.constant 0 : index
    %c0_0 = arith.constant 0 : index
    %0 = vector.load %arg1[%c0, %c0_0] : memref<72x128xbf16, #tpu.memory_space<vmem>>, vector<72x128xbf16>
    %c0_1 = arith.constant 0 : index
    %c0_2 = arith.constant 0 : index
    %1 = vector.load %arg2[%c0_1, %c0_2] : memref<128x1280xbf16, #tpu.memory_space<vmem>>, vector<128x1280xbf16>
    %cst = arith.constant dense<0.000000e+00> : vector<72x1280xf32>
    %2 = tpu.matmul %0, %1, %cst {dimension_numbers = #tpu.dot_dimension_numbers<[1], [0], [0], [1], [0, 0, 1, 1], [], []>} : vector<72x128xbf16>, vector<128x1280xbf16>, vector<72x1280xf32> -> vector<72x1280xf32>
    %c0_3 = arith.constant 0 : index
    %c0_4 = arith.constant 0 : index
    %3 = vector.load %arg3[%c0_3, %c0_4] : memref<1x1280xf32, #tpu.memory_space<vmem>>, vector<1x1280xf32>
    %4 = vector.broadcast %3 : vector<1x1280xf32> to vector<72x1280xf32>
    %5 = arith.addf %2, %4 : vector<72x1280xf32>
    %cst_5 = arith.constant 0.000000e+00 : f32
    %6 = vector.broadcast %cst_5 : f32 to vector<72x1280xf32>
    %7 = arith.maximumf %5, %6 : vector<72x1280xf32>
    %8 = arith.truncf %7 : vector<72x1280xf32> to vector<72x1280xbf16>
    %c0_6 = arith.constant 0 : index
    %c0_7 = arith.constant 0 : index
    %9 = vector.load %arg4[%c0_6, %c0_7] : memref<1280x128xbf16, #tpu.memory_space<vmem>>, vector<1280x128xbf16>
    %cst_8 = arith.constant dense<0.000000e+00> : vector<72x128xf32>
    %10 = tpu.matmul %8, %9, %cst_8 {dimension_numbers = #tpu.dot_dimension_numbers<[1], [0], [0], [1], [0, 0, 1, 1], [], []>} : vector<72x1280xbf16>, vector<1280x128xbf16>, vector<72x128xf32> -> vector<72x128xf32>
    %c0_9 = arith.constant 0 : index
    %c0_10 = arith.constant 0 : index
    %11 = vector.load %arg5[%c0_9, %c0_10] : memref<1x128xf32, #tpu.memory_space<vmem>>, vector<1x128xf32>
    %12 = vector.broadcast %11 : vector<1x128xf32> to vector<72x128xf32>
    %13 = arith.addf %10, %12 : vector<72x128xf32>
    %14 = vector.extract_strided_slice %13 {offsets = [0, 0], sizes = [8, 128], strides = [1, 1]} : vector<72x128xf32> to vector<8x128xf32>
    %15 = vector.extract_strided_slice %13 {offsets = [8, 0], sizes = [8, 128], strides = [1, 1]} : vector<72x128xf32> to vector<8x128xf32>
    %16 = vector.extract_strided_slice %13 {offsets = [16, 0], sizes = [8, 128], strides = [1, 1]} : vector<72x128xf32> to vector<8x128xf32>
    %17 = vector.extract_strided_slice %13 {offsets = [24, 0], sizes = [8, 128], strides = [1, 1]} : vector<72x128xf32> to vector<8x128xf32>
    %18 = vector.extract_strided_slice %13 {offsets = [32, 0], sizes = [8, 128], strides = [1, 1]} : vector<72x128xf32> to vector<8x128xf32>
    %19 = vector.extract_strided_slice %13 {offsets = [40, 0], sizes = [8, 128], strides = [1, 1]} : vector<72x128xf32> to vector<8x128xf32>
    %20 = vector.extract_strided_slice %13 {offsets = [48, 0], sizes = [8, 128], strides = [1, 1]} : vector<72x128xf32> to vector<8x128xf32>
    %21 = vector.extract_strided_slice %13 {offsets = [56, 0], sizes = [8, 128], strides = [1, 1]} : vector<72x128xf32> to vector<8x128xf32>
    %22 = vector.extract_strided_slice %13 {offsets = [64, 0], sizes = [8, 128], strides = [1, 1]} : vector<72x128xf32> to vector<8x128xf32>
    %23 = tpu.concatenate %14, %15, %16, %17, %18, %19, %20, %21, %22 in 1 : vector<8x128xf32>, vector<8x128xf32>, vector<8x128xf32>, vector<8x128xf32>, vector<8x128xf32>, vector<8x128xf32>, vector<8x128xf32>, vector<8x128xf32>, vector<8x128xf32> -> vector<8x1152xf32>
    %24 = arith.truncf %23 : vector<8x1152xf32> to vector<8x1152xbf16>
    %c0_11 = arith.constant 0 : index
    %c0_12 = arith.constant 0 : index
    %25 = vector.load %arg6[%c0_11, %c0_12] : memref<1152x128xbf16, #tpu.memory_space<vmem>>, vector<1152x128xbf16>
    %cst_13 = arith.constant dense<0.000000e+00> : vector<8x128xf32>
    %26 = tpu.matmul %24, %25, %cst_13 {dimension_numbers = #tpu.dot_dimension_numbers<[1], [0], [0], [1], [0, 0, 1, 1], [], []>} : vector<8x1152xbf16>, vector<1152x128xbf16>, vector<8x128xf32> -> vector<8x128xf32>
    %c0_14 = arith.constant 0 : index
    %c0_15 = arith.constant 0 : index
    %27 = vector.load %arg7[%c0_14, %c0_15] : memref<1x128xf32, #tpu.memory_space<vmem>>, vector<1x128xf32>
    %28 = vector.broadcast %27 : vector<1x128xf32> to vector<8x128xf32>
    %29 = arith.addf %26, %28 : vector<8x128xf32>
    %cst_16 = arith.constant 0.000000e+00 : f32
    %30 = vector.broadcast %cst_16 : f32 to vector<8x128xf32>
    %31 = arith.maximumf %29, %30 : vector<8x128xf32>
    %32 = arith.truncf %31 : vector<8x128xf32> to vector<8x128xbf16>
    %c0_17 = arith.constant 0 : index
    %c0_18 = arith.constant 0 : index
    %33 = vector.load %arg8[%c0_17, %c0_18] : memref<128x128xbf16, #tpu.memory_space<vmem>>, vector<128x128xbf16>
    %cst_19 = arith.constant dense<0.000000e+00> : vector<8x128xf32>
    %34 = tpu.matmul %32, %33, %cst_19 {dimension_numbers = #tpu.dot_dimension_numbers<[1], [0], [0], [1], [0, 0, 1, 1], [], []>} : vector<8x128xbf16>, vector<128x128xbf16>, vector<8x128xf32> -> vector<8x128xf32>
    %c0_20 = arith.constant 0 : index
    %c0_21 = arith.constant 0 : index
    %35 = vector.load %arg9[%c0_20, %c0_21] : memref<1x128xf32, #tpu.memory_space<vmem>>, vector<1x128xf32>
    %36 = vector.broadcast %35 : vector<1x128xf32> to vector<8x128xf32>
    %37 = arith.addf %34, %36 : vector<8x128xf32>
    %38 = arith.truncf %37 : vector<8x128xf32> to vector<8x128xbf16>
    %c0_22 = arith.constant 0 : index
    %c0_23 = arith.constant 0 : index
    %39 = vector.load %arg10[%c0_22, %c0_23] : memref<128x128xbf16, #tpu.memory_space<vmem>>, vector<128x128xbf16>
    %cst_24 = arith.constant dense<0.000000e+00> : vector<8x128xf32>
    %40 = tpu.matmul %38, %39, %cst_24 {dimension_numbers = #tpu.dot_dimension_numbers<[1], [0], [0], [1], [0, 0, 1, 1], [], []>} : vector<8x128xbf16>, vector<128x128xbf16>, vector<8x128xf32> -> vector<8x128xf32>
    %c0_25 = arith.constant 0 : index
    %c0_26 = arith.constant 0 : index
    %41 = vector.load %arg11[%c0_25, %c0_26] : memref<1x128xf32, #tpu.memory_space<vmem>>, vector<1x128xf32>
    %42 = vector.broadcast %41 : vector<1x128xf32> to vector<8x128xf32>
    %43 = arith.addf %40, %42 : vector<8x128xf32>
    %cst_27 = arith.constant 0.000000e+00 : f32
    %44 = vector.broadcast %cst_27 : f32 to vector<8x128xf32>
    %45 = arith.maximumf %43, %44 : vector<8x128xf32>
    %46 = arith.truncf %45 : vector<8x128xf32> to vector<8x128xbf16>
    %c0_28 = arith.constant 0 : index
    %c0_29 = arith.constant 0 : index
    %47 = vector.load %arg12[%c0_28, %c0_29] : memref<128x128xbf16, #tpu.memory_space<vmem>>, vector<128x128xbf16>
    %cst_30 = arith.constant dense<0.000000e+00> : vector<8x128xf32>
    %48 = tpu.matmul %46, %47, %cst_30 {dimension_numbers = #tpu.dot_dimension_numbers<[1], [0], [0], [1], [0, 0, 1, 1], [], []>} : vector<8x128xbf16>, vector<128x128xbf16>, vector<8x128xf32> -> vector<8x128xf32>
    %c0_31 = arith.constant 0 : index
    %c0_32 = arith.constant 0 : index
    %49 = vector.load %arg13[%c0_31, %c0_32] : memref<1x128xf32, #tpu.memory_space<vmem>>, vector<1x128xf32>
    %50 = vector.broadcast %49 : vector<1x128xf32> to vector<8x128xf32>
    %51 = arith.addf %48, %50 : vector<8x128xf32>
    %c0_33 = arith.constant 0 : index
    %c0_34 = arith.constant 0 : index
    %52 = vector.load %arg14[%c0_33, %c0_34] : memref<8x128xf32, #tpu.memory_space<vmem>>, vector<8x128xf32>
    tpu.vector_store %arg14[%c0_33, %c0_34], %51 {strides = array<i32>} : memref<8x128xf32, #tpu.memory_space<vmem>>, vector<8x128xf32>,
    return
  }
  func.func @transform_0(%arg0: i32) -> (i32, i32) {
    %c0_i32 = arith.constant 0 : i32
    %c0_i32_0 = arith.constant 0 : i32
    %c0_i32_1 = arith.constant 0 : i32
    return %c0_i32, %c0_i32_0 : i32, i32
  }
  func.func @transform_1(%arg0: i32) -> (i32, i32) {
    %c0_i32 = arith.constant 0 : i32
    %c0_i32_0 = arith.constant 0 : i32
    %c0_i32_1 = arith.constant 0 : i32
    return %c0_i32, %c0_i32_0 : i32, i32
  }
  func.func @transform_2(%arg0: i32) -> (i32, i32) {
    %c0_i32 = arith.constant 0 : i32
    %c0_i32_0 = arith.constant 0 : i32
    %c0_i32_1 = arith.constant 0 : i32
    return %c0_i32, %c0_i32_0 : i32, i32
  }
  func.func @transform_3(%arg0: i32) -> (i32, i32) {
    %c0_i32 = arith.constant 0 : i32
    %c0_i32_0 = arith.constant 0 : i32
    %c0_i32_1 = arith.constant 0 : i32
    return %c0_i32, %c0_i32_0 : i32, i32
  }
  func.func @transform_4(%arg0: i32) -> (i32, i32) {
    %c0_i32 = arith.constant 0 : i32
    %c0_i32_0 = arith.constant 0 : i32
    %c0_i32_1 = arith.constant 0 : i32
    return %c0_i32, %c0_i32_0 : i32, i32
  }
  func.func @transform_5(%arg0: i32) -> (i32, i32) {
    %c0_i32 = arith.constant 0 : i32
    %c0_i32_0 = arith.constant 0 : i32
    %c0_i32_1 = arith.constant 0 : i32
    return %c0_i32, %c0_i32_0 : i32, i32
  }
  func.func @transform_6(%arg0: i32) -> (i32, i32) {
    %c0_i32 = arith.constant 0 : i32
    %c0_i32_0 = arith.constant 0 : i32
    %c0_i32_1 = arith.constant 0 : i32
    return %c0_i32, %c0_i32_0 : i32, i32
  }
  func.func @transform_7(%arg0: i32) -> (i32, i32) {
    %c0_i32 = arith.constant 0 : i32
    %c0_i32_0 = arith.constant 0 : i32
    %c0_i32_1 = arith.constant 0 : i32
    return %c0_i32, %c0_i32_0 : i32, i32
  }
  func.func @transform_8(%arg0: i32) -> (i32, i32) {
    %c0_i32 = arith.constant 0 : i32
    %c0_i32_0 = arith.constant 0 : i32
    %c0_i32_1 = arith.constant 0 : i32
    return %c0_i32, %c0_i32_0 : i32, i32
  }
  func.func @transform_9(%arg0: i32) -> (i32, i32) {
    %c0_i32 = arith.constant 0 : i32
    %c0_i32_0 = arith.constant 0 : i32
    %c0_i32_1 = arith.constant 0 : i32
    return %c0_i32, %c0_i32_0 : i32, i32
  }
  func.func @transform_10(%arg0: i32) -> (i32, i32) {
    %c0_i32 = arith.constant 0 : i32
    %c0_i32_0 = arith.constant 0 : i32
    %c0_i32_1 = arith.constant 0 : i32
    return %c0_i32, %c0_i32_0 : i32, i32
  }
  func.func @transform_11(%arg0: i32) -> (i32, i32) {
    %c0_i32 = arith.constant 0 : i32
    %c0_i32_0 = arith.constant 0 : i32
    %c0_i32_1 = arith.constant 0 : i32
    return %c0_i32, %c0_i32_0 : i32, i32
  }
  func.func @transform_12(%arg0: i32) -> (i32, i32) {
    %c0_i32 = arith.constant 0 : i32
    %c0_i32_0 = arith.constant 0 : i32
    %c0_i32_1 = arith.constant 0 : i32
    return %c0_i32, %c0_i32_0 : i32, i32
  }
  func.func @transform_13(%arg0: i32) -> (i32, i32) {
    %c0_i32 = arith.constant 0 : i32
    %c0_i32_0 = arith.constant 0 : i32
    %c0_i32_1 = arith.constant 0 : i32
    return %c0_i32, %c0_i32_0 : i32, i32
  }
}

</mosaic_0001>

<llo_original>
// kernel: critic_forward.1
$region0: #{critic_forward.1}
  #allocation0 [shape = 'u32[]', space=smem, size = 0x4, offset = 0x4, fixed_abs, tag = 'smem constant byte address 0x4 - core index']
  #allocation1 [shape = 'u32[144,128]{1,0:T(1,128)}', space=vmem, size = 0x12000, scoped, tag = 'internal scratch']
  %s0 = inlined_call_operand.vmem [shape: bf16[72,128], index: 0, kind: input, shape index: {}]
  %s1 = inlined_call_operand.vmem [shape: bf16[128,1280], index: 1, kind: input, shape index: {}]
  %s2 = inlined_call_operand.vmem [shape: f32[1,1280], index: 2, kind: input, shape index: {}]
  %s3 = inlined_call_operand.vmem [shape: bf16[1280,128], index: 3, kind: input, shape index: {}]
  %s4 = inlined_call_operand.vmem [shape: f32[1,128], index: 4, kind: input, shape index: {}]
  %s5 = inlined_call_operand.vmem [shape: bf16[1152,128], index: 5, kind: input, shape index: {}]
  %s6 = inlined_call_operand.vmem [shape: f32[1,128], index: 6, kind: input, shape index: {}]
  %s7 = inlined_call_operand.vmem [shape: bf16[128,128], index: 7, kind: input, shape index: {}]
  %s8 = inlined_call_operand.vmem [shape: f32[1,128], index: 8, kind: input, shape index: {}]
  %s9 = inlined_call_operand.vmem [shape: bf16[128,128], index: 9, kind: input, shape index: {}]
  %s10 = inlined_call_operand.vmem [shape: f32[1,128], index: 10, kind: input, shape index: {}]
  %s11 = inlined_call_operand.vmem [shape: bf16[128,128], index: 11, kind: input, shape index: {}]
  %s12 = inlined_call_operand.vmem [shape: f32[1,128], index: 12, kind: input, shape index: {}]
  %s13 = inlined_call_operand.vmem [shape: f32[8,128], index: 13, kind: output, shape index: {}]
  %s14 = sld [smem:[#allocation0]]
  $region62: #{critic_forward.1} parent=0
    _
  %s16 = ssub.s32 1, %s14
  %s17 = scalar_select 0, %s16, %s14
  // Predicated region
  $region2: #{critic_forward.1} parent=0 // pred_check
    _
  $region3: #{critic_forward.1} parent=0 // pred_check_branch
    %19 = sbr.rel (0) target = $region5
  $region4: #{critic_forward.1} parent=0 // pred_region
    _
  $region5: #{critic_forward.1} parent=0 // pred_fallthru
    _
  // Predicated region
  $region6: #{critic_forward.1} parent=0 // pred_check
    _
  $region7: #{critic_forward.1} parent=0 // pred_check_branch
    %21 = sbr.rel (0) target = $region9
  $region8: #{critic_forward.1} parent=0 // pred_region
    _
  $region9: #{critic_forward.1} parent=0 // pred_fallthru
    _
  // Predicated region
  $region10: #{critic_forward.1} parent=0 // pred_check
    _
  $region11: #{critic_forward.1} parent=0 // pred_check_branch
    %23 = sbr.rel (0) target = $region13
  $region12: #{critic_forward.1} parent=0 // pred_region
    _
  $region13: #{critic_forward.1} parent=0 // pred_fallthru
    _
  // Predicated region
  $region14: #{critic_forward.1} parent=0 // pred_check
    _
  $region15: #{critic_forward.1} parent=0 // pred_check_branch
    %25 = sbr.rel (0) target = $region17
  $region16: #{critic_forward.1} parent=0 // pred_region
    _
  $region17: #{critic_forward.1} parent=0 // pred_fallthru
    _
  // Predicated region
  $region18: #{critic_forward.1} parent=0 // pred_check
    _
  $region19: #{critic_forward.1} parent=0 // pred_check_branch
    %27 = sbr.rel (0) target = $region21
  $region20: #{critic_forward.1} parent=0 // pred_region
    _
  $region21: #{critic_forward.1} parent=0 // pred_fallthru
    _
  // Predicated region
  $region22: #{critic_forward.1} parent=0 // pred_check
    _
  $region23: #{critic_forward.1} parent=0 // pred_check_branch
    %29 = sbr.rel (0) target = $region25
  $region24: #{critic_forward.1} parent=0 // pred_region
    _
  $region25: #{critic_forward.1} parent=0 // pred_fallthru
    _
  // Predicated region
  $region26: #{critic_forward.1} parent=0 // pred_check
    _
  $region27: #{critic_forward.1} parent=0 // pred_check_branch
    %31 = sbr.rel (0) target = $region29
  $region28: #{critic_forward.1} parent=0 // pred_region
    _
  $region29: #{critic_forward.1} parent=0 // pred_fallthru
    _
  // Predicated region
  $region30: #{critic_forward.1} parent=0 // pred_check
    _
  $region31: #{critic_forward.1} parent=0 // pred_check_branch
    %33 = sbr.rel (0) target = $region33
  $region32: #{critic_forward.1} parent=0 // pred_region
    _
  $region33: #{critic_forward.1} parent=0 // pred_fallthru
    _
  // Predicated region
  $region34: #{critic_forward.1} parent=0 // pred_check
    _
  $region35: #{critic_forward.1} parent=0 // pred_check_branch
    %35 = sbr.rel (0) target = $region37
  $region36: #{critic_forward.1} parent=0 // pred_region
    _
  $region37: #{critic_forward.1} parent=0 // pred_fallthru
    _
  // Predicated region
  $region38: #{critic_forward.1} parent=0 // pred_check
    _
  $region39: #{critic_forward.1} parent=0 // pred_check_branch
    %37 = sbr.rel (0) target = $region41
  $region40: #{critic_forward.1} parent=0 // pred_region
    _
  $region41: #{critic_forward.1} parent=0 // pred_fallthru
    _
  // Predicated region
  $region42: #{critic_forward.1} parent=0 // pred_check
    _
  $region43: #{critic_forward.1} parent=0 // pred_check_branch
    %39 = sbr.rel (0) target = $region45
  $region44: #{critic_forward.1} parent=0 // pred_region
    _
  $region45: #{critic_forward.1} parent=0 // pred_fallthru
    _
  // Predicated region
  $region46: #{critic_forward.1} parent=0 // pred_check
    _
  $region47: #{critic_forward.1} parent=0 // pred_check_branch
    %41 = sbr.rel (0) target = $region49
  $region48: #{critic_forward.1} parent=0 // pred_region
    _
  $region49: #{critic_forward.1} parent=0 // pred_fallthru
    _
  // Predicated region
  $region50: #{critic_forward.1} parent=0 // pred_check
    _
  $region51: #{critic_forward.1} parent=0 // pred_check_branch
    %43 = sbr.rel (0) target = $region53
  $region52: #{critic_forward.1} parent=0 // pred_region
    _
  $region53: #{critic_forward.1} parent=0 // pred_fallthru
    _
  %v45 = vld [vmem:[%s0] sm:$0xf]
  %v46 = vld [vmem:[%s0 + $0x4] sm:$0xf]
  %v47 = vld [vmem:[%s0 + $0x8] sm:$0xf]
  %v48 = vld [vmem:[%s0 + $0xc] sm:$0xf]
  %v49 = vld [vmem:[%s0 + $0x10] sm:$0xf]
  %v50 = vld [vmem:[%s0 + $0x14] sm:$0xf]
  %v51 = vld [vmem:[%s0 + $0x18] sm:$0xf]
  %v52 = vld [vmem:[%s0 + $0x1c] sm:$0xf]
  %v53 = vld [vmem:[%s0 + $0x20] sm:$0xf]
  %v54 = vld [vmem:[%s1] sm:$0xff]
  %v55 = vld [vmem:[%s1 + $0x8] sm:$0xff]
  %v56 = vld [vmem:[%s1 + $0x10] sm:$0xff]
  %v57 = vld [vmem:[%s1 + $0x18] sm:$0xff]
  %v58 = vld [vmem:[%s1 + $0x20] sm:$0xff]
  %v59 = vld [vmem:[%s1 + $0x28] sm:$0xff]
  %v60 = vld [vmem:[%s1 + $0x30] sm:$0xff]
  %v61 = vld [vmem:[%s1 + $0x38] sm:$0xff]
  %v62 = vld [vmem:[%s1 + $0x40] sm:$0xff]
  %v63 = vld [vmem:[%s1 + $0x48] sm:$0xff]
  %v64 = vld [vmem:[%s1 + $0x50] sm:$0xff]
  %v65 = vld [vmem:[%s1 + $0x58] sm:$0xff]
  %v66 = vld [vmem:[%s1 + $0x60] sm:$0xff]
  %v67 = vld [vmem:[%s1 + $0x68] sm:$0xff]
  %v68 = vld [vmem:[%s1 + $0x70] sm:$0xff]
  %v69 = vld [vmem:[%s1 + $0x78] sm:$0xff]
  %v70 = vld [vmem:[%s1 + $0x80] sm:$0xff]
  %v71 = vld [vmem:[%s1 + $0x88] sm:$0xff]
  %v72 = vld [vmem:[%s1 + $0x90] sm:$0xff]
  %v73 = vld [vmem:[%s1 + $0x98] sm:$0xff]
  %v74 = vld [vmem:[%s1 + $0xa0] sm:$0xff]
  %v75 = vld [vmem:[%s1 + $0xa8] sm:$0xff]
  %v76 = vld [vmem:[%s1 + $0xb0] sm:$0xff]
  %v77 = vld [vmem:[%s1 + $0xb8] sm:$0xff]
  %v78 = vld [vmem:[%s1 + $0xc0] sm:$0xff]
  %v79 = vld [vmem:[%s1 + $0xc8] sm:$0xff]
  %v80 = vld [vmem:[%s1 + $0xd0] sm:$0xff]
  %v81 = vld [vmem:[%s1 + $0xd8] sm:$0xff]
  %v82 = vld [vmem:[%s1 + $0xe0] sm:$0xff]
  %v83 = vld [vmem:[%s1 + $0xe8] sm:$0xff]
  %v84 = vld [vmem:[%s1 + $0xf0] sm:$0xff]
  %v85 = vld [vmem:[%s1 + $0xf8] sm:$0xff]
  %v86 = vld [vmem:[%s1 + $0x100] sm:$0xff]
  %v87 = vld [vmem:[%s1 + $0x108] sm:$0xff]
  %v88 = vld [vmem:[%s1 + $0x110] sm:$0xff]
  %v89 = vld [vmem:[%s1 + $0x118] sm:$0xff]
  %v90 = vld [vmem:[%s1 + $0x120] sm:$0xff]
  %v91 = vld [vmem:[%s1 + $0x128] sm:$0xff]
  %v92 = vld [vmem:[%s1 + $0x130] sm:$0xff]
  %v93 = vld [vmem:[%s1 + $0x138] sm:$0xff]
  %v94 = vld [vmem:[%s1 + $0x140] sm:$0xff]
  %v95 = vld [vmem:[%s1 + $0x148] sm:$0xff]
  %v96 = vld [vmem:[%s1 + $0x150] sm:$0xff]
  %v97 = vld [vmem:[%s1 + $0x158] sm:$0xff]
  %v98 = vld [vmem:[%s1 + $0x160] sm:$0xff]
  %v99 = vld [vmem:[%s1 + $0x168] sm:$0xff]
  %v100 = vld [vmem:[%s1 + $0x170] sm:$0xff]
  %v101 = vld [vmem:[%s1 + $0x178] sm:$0xff]
  %v102 = vld [vmem:[%s1 + $0x180] sm:$0xff]
  %v103 = vld [vmem:[%s1 + $0x188] sm:$0xff]
  %v104 = vld [vmem:[%s1 + $0x190] sm:$0xff]
  %v105 = vld [vmem:[%s1 + $0x198] sm:$0xff]
  %v106 = vld [vmem:[%s1 + $0x1a0] sm:$0xff]
  %v107 = vld [vmem:[%s1 + $0x1a8] sm:$0xff]
  %v108 = vld [vmem:[%s1 + $0x1b0] sm:$0xff]
  %v109 = vld [vmem:[%s1 + $0x1b8] sm:$0xff]
  %v110 = vld [vmem:[%s1 + $0x1c0] sm:$0xff]
  %v111 = vld [vmem:[%s1 + $0x1c8] sm:$0xff]
  %v112 = vld [vmem:[%s1 + $0x1d0] sm:$0xff]
  %v113 = vld [vmem:[%s1 + $0x1d8] sm:$0xff]
  %v114 = vld [vmem:[%s1 + $0x1e0] sm:$0xff]
  %v115 = vld [vmem:[%s1 + $0x1e8] sm:$0xff]
  %v116 = vld [vmem:[%s1 + $0x1f0] sm:$0xff]
  %v117 = vld [vmem:[%s1 + $0x1f8] sm:$0xff]
  %v118 = vld [vmem:[%s1 + $0x200] sm:$0xff]
  %v119 = vld [vmem:[%s1 + $0x208] sm:$0xff]
  %v120 = vld [vmem:[%s1 + $0x210] sm:$0xff]
  %v121 = vld [vmem:[%s1 + $0x218] sm:$0xff]
  %v122 = vld [vmem:[%s1 + $0x220] sm:$0xff]
  %v123 = vld [vmem:[%s1 + $0x228] sm:$0xff]
  %v124 = vld [vmem:[%s1 + $0x230] sm:$0xff]
  %v125 = vld [vmem:[%s1 + $0x238] sm:$0xff]
  %v126 = vld [vmem:[%s1 + $0x240] sm:$0xff]
  %v127 = vld [vmem:[%s1 + $0x248] sm:$0xff]
  %v128 = vld [vmem:[%s1 + $0x250] sm:$0xff]
  %v129 = vld [vmem:[%s1 + $0x258] sm:$0xff]
  %v130 = vld [vmem:[%s1 + $0x260] sm:$0xff]
  %v131 = vld [vmem:[%s1 + $0x268] sm:$0xff]
  %v132 = vld [vmem:[%s1 + $0x270] sm:$0xff]
  %v133 = vld [vmem:[%s1 + $0x278] sm:$0xff]
  %v134 = vld [vmem:[%s2] sm:$0xff]
  %v135 = vld [vmem:[%s2 + $0x8] sm:$0x3]
  %v138 = vlaneseq
  %v139 = vshrl.u32 %v138, 7
  %v140 = vsub.s32 0, %v139
  %v141 = vrot.slane %v134, %v140
  %v142 = vlaneseq
  %v143 = vshrl.u32 %v142, 7
  %v144 = vsub.s32 1, %v143
  %v145 = vrot.slane %v134, %v144
  %v146 = vlaneseq
  %v147 = vshrl.u32 %v146, 7
  %v148 = vsub.s32 2, %v147
  %v149 = vrot.slane %v134, %v148
  %v150 = vlaneseq
  %v151 = vshrl.u32 %v150, 7
  %v152 = vsub.s32 3, %v151
  %v153 = vrot.slane %v134, %v152
  %v154 = vlaneseq
  %v155 = vshrl.u32 %v154, 7
  %v156 = vsub.s32 4, %v155
  %v157 = vrot.slane %v134, %v156
  %v158 = vlaneseq
  %v159 = vshrl.u32 %v158, 7
  %v160 = vsub.s32 5, %v159
  %v161 = vrot.slane %v134, %v160
  %v162 = vlaneseq
  %v163 = vshrl.u32 %v162, 7
  %v164 = vsub.s32 6, %v163
  %v165 = vrot.slane %v134, %v164
  %v166 = vlaneseq
  %v167 = vshrl.u32 %v166, 7
  %v168 = vsub.s32 7, %v167
  %v169 = vrot.slane %v134, %v168
  %v170 = vlaneseq
  %v171 = vshrl.u32 %v170, 7
  %v172 = vsub.s32 0, %v171
  %v173 = vrot.slane %v135, %v172
  %v174 = vlaneseq
  %v175 = vshrl.u32 %v174, 7
  %v176 = vsub.s32 1, %v175
  %v177 = vrot.slane %v135, %v176
  %v197 = vunpack.c.l.b16 %v45
  %v198 = vunpack.c.l.b16 %v46
  %v199 = vunpack.c.l.b16 %v47
  %v200 = vunpack.c.l.b16 %v48
  %v201 = vunpack.c.l.b16 %v49
  %v202 = vunpack.c.l.b16 %v50
  %v203 = vunpack.c.l.b16 %v51
  %v204 = vunpack.c.l.b16 %v52
  %v205 = vunpack.c.l.b16 %v53
  %v206 = vpack.c.b16 %v198, %v197
  %v207 = vpack.c.b16 %v200, %v199
  %v208 = vpack.c.b16 %v202, %v201
  %v209 = vpack.c.b16 %v204, %v203
  %v210 = vpack.c.b16 %v205, %v205
  %v296 = vunpack.c.l.b16 %v54
  %v297 = vunpack.c.h.b16 %v54
  %v298 = vunpack.c.l.b16 %v55
  %v299 = vunpack.c.h.b16 %v55
  %v300 = vunpack.c.l.b16 %v56
  %v301 = vunpack.c.h.b16 %v56
  %v302 = vunpack.c.l.b16 %v57
  %v303 = vunpack.c.h.b16 %v57
  %v304 = vunpack.c.l.b16 %v58
  %v305 = vunpack.c.h.b16 %v58
  %v306 = vunpack.c.l.b16 %v59
  %v307 = vunpack.c.h.b16 %v59
  %v308 = vunpack.c.l.b16 %v60
  %v309 = vunpack.c.h.b16 %v60
  %v310 = vunpack.c.l.b16 %v61
  %v311 = vunpack.c.h.b16 %v61
  %v312 = vunpack.c.l.b16 %v62
  %v313 = vunpack.c.h.b16 %v62
  %v314 = vunpack.c.l.b16 %v63
  %v315 = vunpack.c.h.b16 %v63
  %v316 = vunpack.c.l.b16 %v64
  %v317 = vunpack.c.h.b16 %v64
  %v318 = vunpack.c.l.b16 %v65
  %v319 = vunpack.c.h.b16 %v65
  %v320 = vunpack.c.l.b16 %v66
  %v321 = vunpack.c.h.b16 %v66
  %v322 = vunpack.c.l.b16 %v67
  %v323 = vunpack.c.h.b16 %v67
  %v324 = vunpack.c.l.b16 %v68
  %v325 = vunpack.c.h.b16 %v68
  %v326 = vunpack.c.l.b16 %v69
  %v327 = vunpack.c.h.b16 %v69
  %v328 = vunpack.c.l.b16 %v70
  %v329 = vunpack.c.h.b16 %v70
  %v330 = vunpack.c.l.b16 %v71
  %v331 = vunpack.c.h.b16 %v71
  %v332 = vunpack.c.l.b16 %v72
  %v333 = vunpack.c.h.b16 %v72
  %v334 = vunpack.c.l.b16 %v73
  %v335 = vunpack.c.h.b16 %v73
  %v336 = vunpack.c.l.b16 %v74
  %v337 = vunpack.c.h.b16 %v74
  %v338 = vunpack.c.l.b16 %v75
  %v339 = vunpack.c.h.b16 %v75
  %v340 = vunpack.c.l.b16 %v76
  %v341 = vunpack.c.h.b16 %v76
  %v342 = vunpack.c.l.b16 %v77
  %v343 = vunpack.c.h.b16 %v77
  %v344 = vunpack.c.l.b16 %v78
  %v345 = vunpack.c.h.b16 %v78
  %v346 = vunpack.c.l.b16 %v79
  %v347 = vunpack.c.h.b16 %v79
  %v348 = vunpack.c.l.b16 %v80
  %v349 = vunpack.c.h.b16 %v80
  %v350 = vunpack.c.l.b16 %v81
  %v351 = vunpack.c.h.b16 %v81
  %v352 = vunpack.c.l.b16 %v82
  %v353 = vunpack.c.h.b16 %v82
  %v354 = vunpack.c.l.b16 %v83
  %v355 = vunpack.c.h.b16 %v83
  %v356 = vunpack.c.l.b16 %v84
  %v357 = vunpack.c.h.b16 %v84
  %v358 = vunpack.c.l.b16 %v85
  %v359 = vunpack.c.h.b16 %v85
  %v360 = vunpack.c.l.b16 %v86
  %v361 = vunpack.c.h.b16 %v86
  %v362 = vunpack.c.l.b16 %v87
  %v363 = vunpack.c.h.b16 %v87
  %v364 = vunpack.c.l.b16 %v88
  %v365 = vunpack.c.h.b16 %v88
  %v366 = vunpack.c.l.b16 %v89
  %v367 = vunpack.c.h.b16 %v89
  %v368 = vunpack.c.l.b16 %v90
  %v369 = vunpack.c.h.b16 %v90
  %v370 = vunpack.c.l.b16 %v91
  %v371 = vunpack.c.h.b16 %v91
  %v372 = vunpack.c.l.b16 %v92
  %v373 = vunpack.c.h.b16 %v92
  %v374 = vunpack.c.l.b16 %v93
  %v375 = vunpack.c.h.b16 %v93
  %v376 = vunpack.c.l.b16 %v94
  %v377 = vunpack.c.h.b16 %v94
  %v378 = vunpack.c.l.b16 %v95
  %v379 = vunpack.c.h.b16 %v95
  %v380 = vunpack.c.l.b16 %v96
  %v381 = vunpack.c.h.b16 %v96
  %v382 = vunpack.c.l.b16 %v97
  %v383 = vunpack.c.h.b16 %v97
  %v384 = vunpack.c.l.b16 %v98
  %v385 = vunpack.c.h.b16 %v98
  %v386 = vunpack.c.l.b16 %v99
  %v387 = vunpack.c.h.b16 %v99
  %v388 = vunpack.c.l.b16 %v100
  %v389 = vunpack.c.h.b16 %v100
  %v390 = vunpack.c.l.b16 %v101
  %v391 = vunpack.c.h.b16 %v101
  %v392 = vunpack.c.l.b16 %v102
  %v393 = vunpack.c.h.b16 %v102
  %v394 = vunpack.c.l.b16 %v103
  %v395 = vunpack.c.h.b16 %v103
  %v396 = vunpack.c.l.b16 %v104
  %v397 = vunpack.c.h.b16 %v104
  %v398 = vunpack.c.l.b16 %v105
  %v399 = vunpack.c.h.b16 %v105
  %v400 = vunpack.c.l.b16 %v106
  %v401 = vunpack.c.h.b16 %v106
  %v402 = vunpack.c.l.b16 %v107
  %v403 = vunpack.c.h.b16 %v107
  %v404 = vunpack.c.l.b16 %v108
  %v405 = vunpack.c.h.b16 %v108
  %v406 = vunpack.c.l.b16 %v109
  %v407 = vunpack.c.h.b16 %v109
  %v408 = vunpack.c.l.b16 %v110
  %v409 = vunpack.c.h.b16 %v110
  %v410 = vunpack.c.l.b16 %v111
  %v411 = vunpack.c.h.b16 %v111
  %v412 = vunpack.c.l.b16 %v112
  %v413 = vunpack.c.h.b16 %v112
  %v414 = vunpack.c.l.b16 %v113
  %v415 = vunpack.c.h.b16 %v113
  %v416 = vunpack.c.l.b16 %v114
  %v417 = vunpack.c.h.b16 %v114
  %v418 = vunpack.c.l.b16 %v115
  %v419 = vunpack.c.h.b16 %v115
  %v420 = vunpack.c.l.b16 %v116
  %v421 = vunpack.c.h.b16 %v116
  %v422 = vunpack.c.l.b16 %v117
  %v423 = vunpack.c.h.b16 %v117
  %v424 = vunpack.c.l.b16 %v118
  %v425 = vunpack.c.h.b16 %v118
  %v426 = vunpack.c.l.b16 %v119
  %v427 = vunpack.c.h.b16 %v119
  %v428 = vunpack.c.l.b16 %v120
  %v429 = vunpack.c.h.b16 %v120
  %v430 = vunpack.c.l.b16 %v121
  %v431 = vunpack.c.h.b16 %v121
  %v432 = vunpack.c.l.b16 %v122
  %v433 = vunpack.c.h.b16 %v122
  %v434 = vunpack.c.l.b16 %v123
  %v435 = vunpack.c.h.b16 %v123
  %v436 = vunpack.c.l.b16 %v124
  %v437 = vunpack.c.h.b16 %v124
  %v438 = vunpack.c.l.b16 %v125
  %v439 = vunpack.c.h.b16 %v125
  %v440 = vunpack.c.l.b16 %v126
  %v441 = vunpack.c.h.b16 %v126
  %v442 = vunpack.c.l.b16 %v127
  %v443 = vunpack.c.h.b16 %v127
  %v444 = vunpack.c.l.b16 %v128
  %v445 = vunpack.c.h.b16 %v128
  %v446 = vunpack.c.l.b16 %v129
  %v447 = vunpack.c.h.b16 %v129
  %v448 = vunpack.c.l.b16 %v130
  %v449 = vunpack.c.h.b16 %v130
  %v450 = vunpack.c.l.b16 %v131
  %v451 = vunpack.c.h.b16 %v131
  %v452 = vunpack.c.l.b16 %v132
  %v453 = vunpack.c.h.b16 %v132
  %v454 = vunpack.c.l.b16 %v133
  %v455 = vunpack.c.h.b16 %v133
  %v456 = vpack.c.b16 %v306, %v296
  %v457 = vpack.c.b16 %v307, %v297
  %v458 = vpack.c.b16 %v308, %v298
  %v459 = vpack.c.b16 %v309, %v299
  %v460 = vpack.c.b16 %v310, %v300
  %v461 = vpack.c.b16 %v311, %v301
  %v462 = vpack.c.b16 %v312, %v302
  %v463 = vpack.c.b16 %v313, %v303
  %v464 = vpack.c.b16 %v314, %v304
  %v465 = vpack.c.b16 %v315, %v305
  %v466 = vpack.c.b16 %v326, %v316
  %v467 = vpack.c.b16 %v327, %v317
  %v468 = vpack.c.b16 %v328, %v318
  %v469 = vpack.c.b16 %v329, %v319
  %v470 = vpack.c.b16 %v330, %v320
  %v471 = vpack.c.b16 %v331, %v321
  %v472 = vpack.c.b16 %v332, %v322
  %v473 = vpack.c.b16 %v333, %v323
  %v474 = vpack.c.b16 %v334, %v324
  %v475 = vpack.c.b16 %v335, %v325
  %v476 = vpack.c.b16 %v346, %v336
  %v477 = vpack.c.b16 %v347, %v337
  %v478 = vpack.c.b16 %v348, %v338
  %v479 = vpack.c.b16 %v349, %v339
  %v480 = vpack.c.b16 %v350, %v340
  %v481 = vpack.c.b16 %v351, %v341
  %v482 = vpack.c.b16 %v352, %v342
  %v483 = vpack.c.b16 %v353, %v343
  %v484 = vpack.c.b16 %v354, %v344
  %v485 = vpack.c.b16 %v355, %v345
  %v486 = vpack.c.b16 %v366, %v356
  %v487 = vpack.c.b16 %v367, %v357
  %v488 = vpack.c.b16 %v368, %v358
  %v489 = vpack.c.b16 %v369, %v359
  %v490 = vpack.c.b16 %v370, %v360
  %v491 = vpack.c.b16 %v371, %v361
  %v492 = vpack.c.b16 %v372, %v362
  %v493 = vpack.c.b16 %v373, %v363
  %v494 = vpack.c.b16 %v374, %v364
  %v495 = vpack.c.b16 %v375, %v365
  %v496 = vpack.c.b16 %v386, %v376
  %v497 = vpack.c.b16 %v387, %v377
  %v498 = vpack.c.b16 %v388, %v378
  %v499 = vpack.c.b16 %v389, %v379
  %v500 = vpack.c.b16 %v390, %v380
  %v501 = vpack.c.b16 %v391, %v381
  %v502 = vpack.c.b16 %v392, %v382
  %v503 = vpack.c.b16 %v393, %v383
  %v504 = vpack.c.b16 %v394, %v384
  %v505 = vpack.c.b16 %v395, %v385
  %v506 = vpack.c.b16 %v406, %v396
  %v507 = vpack.c.b16 %v407, %v397
  %v508 = vpack.c.b16 %v408, %v398
  %v509 = vpack.c.b16 %v409, %v399
  %v510 = vpack.c.b16 %v410, %v400
  %v511 = vpack.c.b16 %v411, %v401
  %v512 = vpack.c.b16 %v412, %v402
  %v513 = vpack.c.b16 %v413, %v403
  %v514 = vpack.c.b16 %v414, %v404
  %v515 = vpack.c.b16 %v415, %v405
  %v516 = vpack.c.b16 %v426, %v416
  %v517 = vpack.c.b16 %v427, %v417
  %v518 = vpack.c.b16 %v428, %v418
  %v519 = vpack.c.b16 %v429, %v419
  %v520 = vpack.c.b16 %v430, %v420
  %v521 = vpack.c.b16 %v431, %v421
  %v522 = vpack.c.b16 %v432, %v422
  %v523 = vpack.c.b16 %v433, %v423
  %v524 = vpack.c.b16 %v434, %v424
  %v525 = vpack.c.b16 %v435, %v425
  %v526 = vpack.c.b16 %v446, %v436
  %v527 = vpack.c.b16 %v447, %v437
  %v528 = vpack.c.b16 %v448, %v438
  %v529 = vpack.c.b16 %v449, %v439
  %v530 = vpack.c.b16 %v450, %v440
  %v531 = vpack.c.b16 %v451, %v441
  %v532 = vpack.c.b16 %v452, %v442
  %v533 = vpack.c.b16 %v453, %v443
  %v534 = vpack.c.b16 %v454, %v444
  %v535 = vpack.c.b16 %v455, %v445
  %616 = vmatprep.subr.bf16.mxu0 %v457
  %617 = vmatpush1.bf16.msra.mxu0 %v456
  %618 = vmatprep.subr.bf16.mxu0 %v467
  %619 = vmatpush1.bf16.msra.mxu0 %v466
  %620 = vmatprep.subr.bf16.mxu0 %v477
  %621 = vmatpush1.bf16.msra.mxu0 %v476
  %622 = vmatprep.subr.bf16.mxu0 %v487
  %623 = vmatpush1.bf16.msra.mxu0 %v486
  %624 = vmatprep.subr.bf16.mxu0 %v497
  %625 = vmatpush1.bf16.msra.mxu0 %v496
  %626 = vmatprep.subr.bf16.mxu0 %v507
  %627 = vmatpush1.bf16.msra.mxu0 %v506
  %628 = vmatprep.subr.bf16.mxu0 %v517
  %629 = vmatpush1.bf16.msra.mxu0 %v516
  %630 = vmatprep.subr.bf16.mxu0 %v527
  %631 = vmatpush1.bf16.msra.mxu0 %v526
  %632 = vmatprep.subr.bf16.mxu0 0
  %633 = vmatpush1.bf16.msra.mxu0 0
  %634 = vmatprep.subr.bf16.mxu0 0
  %635 = vmatpush1.bf16.msra.mxu0 0
  %636 = vmatprep.subr.bf16.mxu0 0
  %637 = vmatpush1.bf16.msra.mxu0 0
  %638 = vmatprep.subr.bf16.mxu0 0
  %639 = vmatpush1.bf16.msra.mxu0 0
  %640 = vmatprep.subr.bf16.mxu0 0
  %641 = vmatpush1.bf16.msra.mxu0 0
  %642 = vmatprep.subr.bf16.mxu0 0
  %643 = vmatpush1.bf16.msra.mxu0 0
  %644 = vmatprep.subr.bf16.mxu0 0
  %645 = vmatpush1.bf16.msra.mxu0 0
  %646 = vmatprep.subr.bf16.mxu0 0
  %647 = vmatpush1.bf16.msra.mxu0 0
  %648 = vmatprep.mubr.bf16.mxu0 0
  %649 = vmatmul.mubr.bf16.gmra.mrb[0].mxu0 %v206
  %v650 = vpop.f32.mrb[0].mxu0
  %v651 = vadd.f32 %v141, %v650
  %v652 = vpop.f32.mrb[0].mxu0
  %v653 = vadd.f32 %v145, %v652
  %v654 = vpop.f32.mrb[0].mxu0
  %v655 = vadd.f32 %v141, %v654
  %v656 = vpop.f32.mrb[0].mxu0
  %v657 = vadd.f32 %v145, %v656
  %658 = vmatprep.mubr.bf16.mxu0 0
  %659 = vmatmul.mubr.bf16.gmra.mrb[0].mxu0 %v207
  %v660 = vpop.f32.mrb[0].mxu0
  %v661 = vadd.f32 %v141, %v660
  %v662 = vpop.f32.mrb[0].mxu0
  %v663 = vadd.f32 %v145, %v662
  %v664 = vpop.f32.mrb[0].mxu0
  %v665 = vadd.f32 %v141, %v664
  %v666 = vpop.f32.mrb[0].mxu0
  %v667 = vadd.f32 %v145, %v666
  %668 = vmatprep.mubr.bf16.mxu0 0
  %669 = vmatmul.mubr.bf16.gmra.mrb[0].mxu0 %v208
  %v670 = vpop.f32.mrb[0].mxu0
  %v671 = vadd.f32 %v141, %v670
  %v672 = vpop.f32.mrb[0].mxu0
  %v673 = vadd.f32 %v145, %v672
  %v674 = vpop.f32.mrb[0].mxu0
  %v675 = vadd.f32 %v141, %v674
  %v676 = vpop.f32.mrb[0].mxu0
  %v677 = vadd.f32 %v145, %v676
  %678 = vmatprep.mubr.bf16.mxu0 0
  %679 = vmatmul.mubr.bf16.gmra.mrb[0].mxu0 %v209
  %v680 = vpop.f32.mrb[0].mxu0
  %v681 = vadd.f32 %v141, %v680
  %v682 = vpop.f32.mrb[0].mxu0
  %v683 = vadd.f32 %v145, %v682
  %v684 = vpop.f32.mrb[0].mxu0
  %v685 = vadd.f32 %v141, %v684
  %v686 = vpop.f32.mrb[0].mxu0
  %v687 = vadd.f32 %v145, %v686
  %688 = vmatprep.mubr.bf16.mxu0 0
  %689 = vmatmul.mubr.bf16.gmra.mrb[0].mxu0 %v210
  %v690 = vpop.f32.mrb[0].mxu0
  %v691 = vadd.f32 %v141, %v690
  %v692 = vpop.f32.mrb[0].mxu0
  %v693 = vadd.f32 %v145, %v692
  %v694 = vpop.f32.mrb[0].mxu0
  %v695 = vpop.f32.mrb[0].mxu0
  %696 = vdwg.mxu0
  %697 = vmatprep.subr.bf16.mxu0 %v459
  %698 = vmatpush1.bf16.msra.mxu0 %v458
  %699 = vmatprep.subr.bf16.mxu0 %v469
  %700 = vmatpush1.bf16.msra.mxu0 %v468
  %701 = vmatprep.subr.bf16.mxu0 %v479
  %702 = vmatpush1.bf16.msra.mxu0 %v478
  %703 = vmatprep.subr.bf16.mxu0 %v489
  %704 = vmatpush1.bf16.msra.mxu0 %v488
  %705 = vmatprep.subr.bf16.mxu0 %v499
  %706 = vmatpush1.bf16.msra.mxu0 %v498
  %707 = vmatprep.subr.bf16.mxu0 %v509
  %708 = vmatpush1.bf16.msra.mxu0 %v508
  %709 = vmatprep.subr.bf16.mxu0 %v519
  %710 = vmatpush1.bf16.msra.mxu0 %v518
  %711 = vmatprep.subr.bf16.mxu0 %v529
  %712 = vmatpush1.bf16.msra.mxu0 %v528
  %713 = vmatprep.subr.bf16.mxu0 0
  %714 = vmatpush1.bf16.msra.mxu0 0
  %715 = vmatprep.subr.bf16.mxu0 0
  %716 = vmatpush1.bf16.msra.mxu0 0
  %717 = vmatprep.subr.bf16.mxu0 0
  %718 = vmatpush1.bf16.msra.mxu0 0
  %719 = vmatprep.subr.bf16.mxu0 0
  %720 = vmatpush1.bf16.msra.mxu0 0
  %721 = vmatprep.subr.bf16.mxu0 0
  %722 = vmatpush1.bf16.msra.mxu0 0
  %723 = vmatprep.subr.bf16.mxu0 0
  %724 = vmatpush1.bf16.msra.mxu0 0
  %725 = vmatprep.subr.bf16.mxu0 0
  %726 = vmatpush1.bf16.msra.mxu0 0
  %727 = vmatprep.subr.bf16.mxu0 0
  %728 = vmatpush1.bf16.msra.mxu0 0
  %729 = vmatprep.mubr.bf16.mxu0 0
  %730 = vmatmul.mubr.bf16.gmra.mrb[0].mxu0 %v206
  %v731 = vpop.f32.mrb[0].mxu0
  %v732 = vadd.f32 %v149, %v731
  %v733 = vpop.f32.mrb[0].mxu0
  %v734 = vadd.f32 %v153, %v733
  %v735 = vpop.f32.mrb[0].mxu0
  %v736 = vadd.f32 %v149, %v735
  %v737 = vpop.f32.mrb[0].mxu0
  %v738 = vadd.f32 %v153, %v737
  %739 = vmatprep.mubr.bf16.mxu0 0
  %740 = vmatmul.mubr.bf16.gmra.mrb[0].mxu0 %v207
  %v741 = vpop.f32.mrb[0].mxu0
  %v742 = vadd.f32 %v149, %v741
  %v743 = vpop.f32.mrb[0].mxu0
  %v744 = vadd.f32 %v153, %v743
  %v745 = vpop.f32.mrb[0].mxu0
  %v746 = vadd.f32 %v149, %v745
  %v747 = vpop.f32.mrb[0].mxu0
  %v748 = vadd.f32 %v153, %v747
  %749 = vmatprep.mubr.bf16.mxu0 0
  %750 = vmatmul.mubr.bf16.gmra.mrb[0].mxu0 %v208
  %v751 = vpop.f32.mrb[0].mxu0
  %v752 = vadd.f32 %v149, %v751
  %v753 = vpop.f32.mrb[0].mxu0
  %v754 = vadd.f32 %v153, %v753
  %v755 = vpop.f32.mrb[0].mxu0
  %v756 = vadd.f32 %v149, %v755
  %v757 = vpop.f32.mrb[0].mxu0
  %v758 = vadd.f32 %v153, %v757
  %759 = vmatprep.mubr.bf16.mxu0 0
  %760 = vmatmul.mubr.bf16.gmra.mrb[0].mxu0 %v209
  %v761 = vpop.f32.mrb[0].mxu0
  %v762 = vadd.f32 %v149, %v761
  %v763 = vpop.f32.mrb[0].mxu0
  %v764 = vadd.f32 %v153, %v763
  %v765 = vpop.f32.mrb[0].mxu0
  %v766 = vadd.f32 %v149, %v765
  %v767 = vpop.f32.mrb[0].mxu0
  %v768 = vadd.f32 %v153, %v767
  %769 = vmatprep.mubr.bf16.mxu0 0
  %770 = vmatmul.mubr.bf16.gmra.mrb[0].mxu0 %v210
  %v771 = vpop.f32.mrb[0].mxu0
  %v772 = vadd.f32 %v149, %v771
  %v773 = vpop.f32.mrb[0].mxu0
  %v774 = vadd.f32 %v153, %v773
  %v775 = vpop.f32.mrb[0].mxu0
  %v776 = vpop.f32.mrb[0].mxu0
  %777 = vdwg.mxu0
  %778 = vmatprep.subr.bf16.mxu0 %v461
  %779 = vmatpush1.bf16.msra.mxu0 %v460
  %780 = vmatprep.subr.bf16.mxu0 %v471
  %781 = vmatpush1.bf16.msra.mxu0 %v470
  %782 = vmatprep.subr.bf16.mxu0 %v481
  %783 = vmatpush1.bf16.msra.mxu0 %v480
  %784 = vmatprep.subr.bf16.mxu0 %v491
  %785 = vmatpush1.bf16.msra.mxu0 %v490
  %786 = vmatprep.subr.bf16.mxu0 %v501
  %787 = vmatpush1.bf16.msra.mxu0 %v500
  %788 = vmatprep.subr.bf16.mxu0 %v511
  %789 = vmatpush1.bf16.msra.mxu0 %v510
  %790 = vmatprep.subr.bf16.mxu0 %v521
  %791 = vmatpush1.bf16.msra.mxu0 %v520
  %792 = vmatprep.subr.bf16.mxu0 %v531
  %793 = vmatpush1.bf16.msra.mxu0 %v530
  %794 = vmatprep.subr.bf16.mxu0 0
  %795 = vmatpush1.bf16.msra.mxu0 0
  %796 = vmatprep.subr.bf16.mxu0 0
  %797 = vmatpush1.bf16.msra.mxu0 0
  %798 = vmatprep.subr.bf16.mxu0 0
  %799 = vmatpush1.bf16.msra.mxu0 0
  %800 = vmatprep.subr.bf16.mxu0 0
  %801 = vmatpush1.bf16.msra.mxu0 0
  %802 = vmatprep.subr.bf16.mxu0 0
  %803 = vmatpush1.bf16.msra.mxu0 0
  %804 = vmatprep.subr.bf16.mxu0 0
  %805 = vmatpush1.bf16.msra.mxu0 0
  %806 = vmatprep.subr.bf16.mxu0 0
  %807 = vmatpush1.bf16.msra.mxu0 0
  %808 = vmatprep.subr.bf16.mxu0 0
  %809 = vmatpush1.bf16.msra.mxu0 0
  %810 = vmatprep.mubr.bf16.mxu0 0
  %811 = vmatmul.mubr.bf16.gmra.mrb[0].mxu0 %v206
  %v812 = vpop.f32.mrb[0].mxu0
  %v813 = vadd.f32 %v157, %v812
  %v814 = vpop.f32.mrb[0].mxu0
  %v815 = vadd.f32 %v161, %v814
  %v816 = vpop.f32.mrb[0].mxu0
  %v817 = vadd.f32 %v157, %v816
  %v818 = vpop.f32.mrb[0].mxu0
  %v819 = vadd.f32 %v161, %v818
  %820 = vmatprep.mubr.bf16.mxu0 0
  %821 = vmatmul.mubr.bf16.gmra.mrb[0].mxu0 %v207
  %v822 = vpop.f32.mrb[0].mxu0
  %v823 = vadd.f32 %v157, %v822
  %v824 = vpop.f32.mrb[0].mxu0
  %v825 = vadd.f32 %v161, %v824
  %v826 = vpop.f32.mrb[0].mxu0
  %v827 = vadd.f32 %v157, %v826
  %v828 = vpop.f32.mrb[0].mxu0
  %v829 = vadd.f32 %v161, %v828
  %830 = vmatprep.mubr.bf16.mxu0 0
  %831 = vmatmul.mubr.bf16.gmra.mrb[0].mxu0 %v208
  %v832 = vpop.f32.mrb[0].mxu0
  %v833 = vadd.f32 %v157, %v832
  %v834 = vpop.f32.mrb[0].mxu0
  %v835 = vadd.f32 %v161, %v834
  %v836 = vpop.f32.mrb[0].mxu0
  %v837 = vadd.f32 %v157, %v836
  %v838 = vpop.f32.mrb[0].mxu0
  %v839 = vadd.f32 %v161, %v838
  %840 = vmatprep.mubr.bf16.mxu0 0
  %841 = vmatmul.mubr.bf16.gmra.mrb[0].mxu0 %v209
  %v842 = vpop.f32.mrb[0].mxu0
  %v843 = vadd.f32 %v157, %v842
  %v844 = vpop.f32.mrb[0].mxu0
  %v845 = vadd.f32 %v161, %v844
  %v846 = vpop.f32.mrb[0].mxu0
  %v847 = vadd.f32 %v157, %v846
  %v848 = vpop.f32.mrb[0].mxu0
  %v849 = vadd.f32 %v161, %v848
  %850 = vmatprep.mubr.bf16.mxu0 0
  %851 = vmatmul.mubr.bf16.gmra.mrb[0].mxu0 %v210
  %v852 = vpop.f32.mrb[0].mxu0
  %v853 = vadd.f32 %v157, %v852
  %v854 = vpop.f32.mrb[0].mxu0
  %v855 = vadd.f32 %v161, %v854
  %v856 = vpop.f32.mrb[0].mxu0
  %v857 = vpop.f32.mrb[0].mxu0
  %858 = vdwg.mxu0
  %859 = vmatprep.subr.bf16.mxu0 %v463
  %860 = vmatpush1.bf16.msra.mxu0 %v462
  %861 = vmatprep.subr.bf16.mxu0 %v473
  %862 = vmatpush1.bf16.msra.mxu0 %v472
  %863 = vmatprep.subr.bf16.mxu0 %v483
  %864 = vmatpush1.bf16.msra.mxu0 %v482
  %865 = vmatprep.subr.bf16.mxu0 %v493
  %866 = vmatpush1.bf16.msra.mxu0 %v492
  %867 = vmatprep.subr.bf16.mxu0 %v503
  %868 = vmatpush1.bf16.msra.mxu0 %v502
  %869 = vmatprep.subr.bf16.mxu0 %v513
  %870 = vmatpush1.bf16.msra.mxu0 %v512
  %871 = vmatprep.subr.bf16.mxu0 %v523
  %872 = vmatpush1.bf16.msra.mxu0 %v522
  %873 = vmatprep.subr.bf16.mxu0 %v533
  %874 = vmatpush1.bf16.msra.mxu0 %v532
  %875 = vmatprep.subr.bf16.mxu0 0
  %876 = vmatpush1.bf16.msra.mxu0 0
  %877 = vmatprep.subr.bf16.mxu0 0
  %878 = vmatpush1.bf16.msra.mxu0 0
  %879 = vmatprep.subr.bf16.mxu0 0
  %880 = vmatpush1.bf16.msra.mxu0 0
  %881 = vmatprep.subr.bf16.mxu0 0
  %882 = vmatpush1.bf16.msra.mxu0 0
  %883 = vmatprep.subr.bf16.mxu0 0
  %884 = vmatpush1.bf16.msra.mxu0 0
  %885 = vmatprep.subr.bf16.mxu0 0
  %886 = vmatpush1.bf16.msra.mxu0 0
  %887 = vmatprep.subr.bf16.mxu0 0
  %888 = vmatpush1.bf16.msra.mxu0 0
  %889 = vmatprep.subr.bf16.mxu0 0
  %890 = vmatpush1.bf16.msra.mxu0 0
  %891 = vmatprep.mubr.bf16.mxu0 0
  %892 = vmatmul.mubr.bf16.gmra.mrb[0].mxu0 %v206
  %v893 = vpop.f32.mrb[0].mxu0
  %v894 = vadd.f32 %v165, %v893
  %v895 = vpop.f32.mrb[0].mxu0
  %v896 = vadd.f32 %v169, %v895
  %v897 = vpop.f32.mrb[0].mxu0
  %v898 = vadd.f32 %v165, %v897
  %v899 = vpop.f32.mrb[0].mxu0
  %v900 = vadd.f32 %v169, %v899
  %901 = vmatprep.mubr.bf16.mxu0 0
  %902 = vmatmul.mubr.bf16.gmra.mrb[0].mxu0 %v207
  %v903 = vpop.f32.mrb[0].mxu0
  %v904 = vadd.f32 %v165, %v903
  %v905 = vpop.f32.mrb[0].mxu0
  %v906 = vadd.f32 %v169, %v905
  %v907 = vpop.f32.mrb[0].mxu0
  %v908 = vadd.f32 %v165, %v907
  %v909 = vpop.f32.mrb[0].mxu0
  %v910 = vadd.f32 %v169, %v909
  %911 = vmatprep.mubr.bf16.mxu0 0
  %912 = vmatmul.mubr.bf16.gmra.mrb[0].mxu0 %v208
  %v913 = vpop.f32.mrb[0].mxu0
  %v914 = vadd.f32 %v165, %v913
  %v915 = vpop.f32.mrb[0].mxu0
  %v916 = vadd.f32 %v169, %v915
  %v917 = vpop.f32.mrb[0].mxu0
  %v918 = vadd.f32 %v165, %v917
  %v919 = vpop.f32.mrb[0].mxu0
  %v920 = vadd.f32 %v169, %v919
  %921 = vmatprep.mubr.bf16.mxu0 0
  %922 = vmatmul.mubr.bf16.gmra.mrb[0].mxu0 %v209
  %v923 = vpop.f32.mrb[0].mxu0
  %v924 = vadd.f32 %v165, %v923
  %v925 = vpop.f32.mrb[0].mxu0
  %v926 = vadd.f32 %v169, %v925
  %v927 = vpop.f32.mrb[0].mxu0
  %v928 = vadd.f32 %v165, %v927
  %v929 = vpop.f32.mrb[0].mxu0
  %v930 = vadd.f32 %v169, %v929
  %931 = vmatprep.mubr.bf16.mxu0 0
  %932 = vmatmul.mubr.bf16.gmra.mrb[0].mxu0 %v210
  %v933 = vpop.f32.mrb[0].mxu0
  %v934 = vadd.f32 %v165, %v933
  %v935 = vpop.f32.mrb[0].mxu0
  %v936 = vadd.f32 %v169, %v935
  %v937 = vpop.f32.mrb[0].mxu0
  %v938 = vpop.f32.mrb[0].mxu0
  %939 = vdwg.mxu0
  %940 = vmatprep.subr.bf16.mxu0 %v465
  %941 = vmatpush1.bf16.msra.mxu0 %v464
  %942 = vmatprep.subr.bf16.mxu0 %v475
  %943 = vmatpush1.bf16.msra.mxu0 %v474
  %944 = vmatprep.subr.bf16.mxu0 %v485
  %945 = vmatpush1.bf16.msra.mxu0 %v484
  %946 = vmatprep.subr.bf16.mxu0 %v495
  %947 = vmatpush1.bf16.msra.mxu0 %v494
  %948 = vmatprep.subr.bf16.mxu0 %v505
  %949 = vmatpush1.bf16.msra.mxu0 %v504
  %950 = vmatprep.subr.bf16.mxu0 %v515
  %951 = vmatpush1.bf16.msra.mxu0 %v514
  %952 = vmatprep.subr.bf16.mxu0 %v525
  %953 = vmatpush1.bf16.msra.mxu0 %v524
  %954 = vmatprep.subr.bf16.mxu0 %v535
  %955 = vmatpush1.bf16.msra.mxu0 %v534
  %956 = vmatprep.subr.bf16.mxu0 0
  %957 = vmatpush1.bf16.msra.mxu0 0
  %958 = vmatprep.subr.bf16.mxu0 0
  %959 = vmatpush1.bf16.msra.mxu0 0
  %960 = vmatprep.subr.bf16.mxu0 0
  %961 = vmatpush1.bf16.msra.mxu0 0
  %962 = vmatprep.subr.bf16.mxu0 0
  %963 = vmatpush1.bf16.msra.mxu0 0
  %964 = vmatprep.subr.bf16.mxu0 0
  %965 = vmatpush1.bf16.msra.mxu0 0
  %966 = vmatprep.subr.bf16.mxu0 0
  %967 = vmatpush1.bf16.msra.mxu0 0
  %968 = vmatprep.subr.bf16.mxu0 0
  %969 = vmatpush1.bf16.msra.mxu0 0
  %970 = vmatprep.subr.bf16.mxu0 0
  %971 = vmatpush1.bf16.msra.mxu0 0
  %972 = vmatprep.mubr.bf16.mxu0 0
  %973 = vmatmul.mubr.bf16.gmra.mrb[0].mxu0 %v206
  %v974 = vpop.f32.mrb[0].mxu0
  %v975 = vadd.f32 %v173, %v974
  %v976 = vpop.f32.mrb[0].mxu0
  %v977 = vadd.f32 %v177, %v976
  %v978 = vpop.f32.mrb[0].mxu0
  %v979 = vadd.f32 %v173, %v978
  %v980 = vpop.f32.mrb[0].mxu0
  %v981 = vadd.f32 %v177, %v980
  %982 = vmatprep.mubr.bf16.mxu0 0
  %983 = vmatmul.mubr.bf16.gmra.mrb[0].mxu0 %v207
  %v984 = vpop.f32.mrb[0].mxu0
  %v985 = vadd.f32 %v173, %v984
  %v986 = vpop.f32.mrb[0].mxu0
  %v987 = vadd.f32 %v177, %v986
  %v988 = vpop.f32.mrb[0].mxu0
  %v989 = vadd.f32 %v173, %v988
  %v990 = vpop.f32.mrb[0].mxu0
  %v991 = vadd.f32 %v177, %v990
  %992 = vmatprep.mubr.bf16.mxu0 0
  %993 = vmatmul.mubr.bf16.gmra.mrb[0].mxu0 %v208
  %v994 = vpop.f32.mrb[0].mxu0
  %v995 = vadd.f32 %v173, %v994
  %v996 = vpop.f32.mrb[0].mxu0
  %v997 = vadd.f32 %v177, %v996
  %v998 = vpop.f32.mrb[0].mxu0
  %v999 = vadd.f32 %v173, %v998
  %v1000 = vpop.f32.mrb[0].mxu0
  %v1001 = vadd.f32 %v177, %v1000
  %1002 = vmatprep.mubr.bf16.mxu0 0
  %1003 = vmatmul.mubr.bf16.gmra.mrb[0].mxu0 %v209
  %v1004 = vpop.f32.mrb[0].mxu0
  %v1005 = vadd.f32 %v173, %v1004
  %v1006 = vpop.f32.mrb[0].mxu0
  %v1007 = vadd.f32 %v177, %v1006
  %v1008 = vpop.f32.mrb[0].mxu0
  %v1009 = vadd.f32 %v173, %v1008
  %v1010 = vpop.f32.mrb[0].mxu0
  %v1011 = vadd.f32 %v177, %v1010
  %1012 = vmatprep.mubr.bf16.mxu0 0
  %1013 = vmatmul.mubr.bf16.gmra.mrb[0].mxu0 %v210
  %v1014 = vpop.f32.mrb[0].mxu0
  %v1015 = vadd.f32 %v173, %v1014
  %v1016 = vpop.f32.mrb[0].mxu0
  %v1017 = vadd.f32 %v177, %v1016
  %v1018 = vpop.f32.mrb[0].mxu0
  %v1019 = vpop.f32.mrb[0].mxu0
  %1020 = vdwg.mxu0
  %v1021 = vmax.f32 %v651, 0.0
  %v1022 = vmax.f32 %v653, 0.0
  %v1023 = vmax.f32 %v732, 0.0
  %v1024 = vmax.f32 %v734, 0.0
  %v1025 = vmax.f32 %v813, 0.0
  %v1026 = vmax.f32 %v815, 0.0
  %v1027 = vmax.f32 %v894, 0.0
  %v1028 = vmax.f32 %v896, 0.0
  %v1029 = vmax.f32 %v975, 0.0
  %v1030 = vmax.f32 %v977, 0.0
  %v1031 = vmax.f32 %v655, 0.0
  %v1032 = vmax.f32 %v657, 0.0
  %v1033 = vmax.f32 %v736, 0.0
  %v1034 = vmax.f32 %v738, 0.0
  %v1035 = vmax.f32 %v817, 0.0
  %v1036 = vmax.f32 %v819, 0.0
  %v1037 = vmax.f32 %v898, 0.0
  %v1038 = vmax.f32 %v900, 0.0
  %v1039 = vmax.f32 %v979, 0.0
  %v1040 = vmax.f32 %v981, 0.0
  %v1041 = vmax.f32 %v661, 0.0
  %v1042 = vmax.f32 %v663, 0.0
  %v1043 = vmax.f32 %v742, 0.0
  %v1044 = vmax.f32 %v744, 0.0
  %v1045 = vmax.f32 %v823, 0.0
  %v1046 = vmax.f32 %v825, 0.0
  %v1047 = vmax.f32 %v904, 0.0
  %v1048 = vmax.f32 %v906, 0.0
  %v1049 = vmax.f32 %v985, 0.0
  %v1050 = vmax.f32 %v987, 0.0
  %v1051 = vmax.f32 %v665, 0.0
  %v1052 = vmax.f32 %v667, 0.0
  %v1053 = vmax.f32 %v746, 0.0
  %v1054 = vmax.f32 %v748, 0.0
  %v1055 = vmax.f32 %v827, 0.0
  %v1056 = vmax.f32 %v829, 0.0
  %v1057 = vmax.f32 %v908, 0.0
  %v1058 = vmax.f32 %v910, 0.0
  %v1059 = vmax.f32 %v989, 0.0
  %v1060 = vmax.f32 %v991, 0.0
  %v1061 = vmax.f32 %v671, 0.0
  %v1062 = vmax.f32 %v673, 0.0
  %v1063 = vmax.f32 %v752, 0.0
  %v1064 = vmax.f32 %v754, 0.0
  %v1065 = vmax.f32 %v833, 0.0
  %v1066 = vmax.f32 %v835, 0.0
  %v1067 = vmax.f32 %v914, 0.0
  %v1068 = vmax.f32 %v916, 0.0
  %v1069 = vmax.f32 %v995, 0.0
  %v1070 = vmax.f32 %v997, 0.0
  %v1071 = vmax.f32 %v675, 0.0
  %v1072 = vmax.f32 %v677, 0.0
  %v1073 = vmax.f32 %v756, 0.0
  %v1074 = vmax.f32 %v758, 0.0
  %v1075 = vmax.f32 %v837, 0.0
  %v1076 = vmax.f32 %v839, 0.0
  %v1077 = vmax.f32 %v918, 0.0
  %v1078 = vmax.f32 %v920, 0.0
  %v1079 = vmax.f32 %v999, 0.0
  %v1080 = vmax.f32 %v1001, 0.0
  %v1081 = vmax.f32 %v681, 0.0
  %v1082 = vmax.f32 %v683, 0.0
  %v1083 = vmax.f32 %v762, 0.0
  %v1084 = vmax.f32 %v764, 0.0
  %v1085 = vmax.f32 %v843, 0.0
  %v1086 = vmax.f32 %v845, 0.0
  %v1087 = vmax.f32 %v924, 0.0
  %v1088 = vmax.f32 %v926, 0.0
  %v1089 = vmax.f32 %v1005, 0.0
  %v1090 = vmax.f32 %v1007, 0.0
  %v1091 = vmax.f32 %v685, 0.0
  %v1092 = vmax.f32 %v687, 0.0
  %v1093 = vmax.f32 %v766, 0.0
  %v1094 = vmax.f32 %v768, 0.0
  %v1095 = vmax.f32 %v847, 0.0
  %v1096 = vmax.f32 %v849, 0.0
  %v1097 = vmax.f32 %v928, 0.0
  %v1098 = vmax.f32 %v930, 0.0
  %v1099 = vmax.f32 %v1009, 0.0
  %v1100 = vmax.f32 %v1011, 0.0
  %v1101 = vmax.f32 %v691, 0.0
  %v1102 = vmax.f32 %v693, 0.0
  %v1103 = vmax.f32 %v772, 0.0
  %v1104 = vmax.f32 %v774, 0.0
  %v1105 = vmax.f32 %v853, 0.0
  %v1106 = vmax.f32 %v855, 0.0
  %v1107 = vmax.f32 %v934, 0.0
  %v1108 = vmax.f32 %v936, 0.0
  %v1109 = vmax.f32 %v1015, 0.0
  %v1110 = vmax.f32 %v1017, 0.0
  %v1111 = vpack.c.bf16 %v1031, %v1021
  %v1112 = vpack.c.bf16 %v1032, %v1022
  %v1113 = vpack.c.bf16 %v1033, %v1023
  %v1114 = vpack.c.bf16 %v1034, %v1024
  %v1115 = vpack.c.bf16 %v1035, %v1025
  %v1116 = vpack.c.bf16 %v1036, %v1026
  %v1117 = vpack.c.bf16 %v1037, %v1027
  %v1118 = vpack.c.bf16 %v1038, %v1028
  %v1119 = vpack.c.bf16 %v1039, %v1029
  %v1120 = vpack.c.bf16 %v1040, %v1030
  %v1121 = vpack.c.bf16 %v1051, %v1041
  %v1122 = vpack.c.bf16 %v1052, %v1042
  %v1123 = vpack.c.bf16 %v1053, %v1043
  %v1124 = vpack.c.bf16 %v1054, %v1044
  %v1125 = vpack.c.bf16 %v1055, %v1045
  %v1126 = vpack.c.bf16 %v1056, %v1046
  %v1127 = vpack.c.bf16 %v1057, %v1047
  %v1128 = vpack.c.bf16 %v1058, %v1048
  %v1129 = vpack.c.bf16 %v1059, %v1049
  %v1130 = vpack.c.bf16 %v1060, %v1050
  %v1131 = vpack.c.bf16 %v1071, %v1061
  %v1132 = vpack.c.bf16 %v1072, %v1062
  %v1133 = vpack.c.bf16 %v1073, %v1063
  %v1134 = vpack.c.bf16 %v1074, %v1064
  %v1135 = vpack.c.bf16 %v1075, %v1065
  %v1136 = vpack.c.bf16 %v1076, %v1066
  %v1137 = vpack.c.bf16 %v1077, %v1067
  %v1138 = vpack.c.bf16 %v1078, %v1068
  %v1139 = vpack.c.bf16 %v1079, %v1069
  %v1140 = vpack.c.bf16 %v1080, %v1070
  %v1141 = vpack.c.bf16 %v1091, %v1081
  %v1142 = vpack.c.bf16 %v1092, %v1082
  %v1143 = vpack.c.bf16 %v1093, %v1083
  %v1144 = vpack.c.bf16 %v1094, %v1084
  %v1145 = vpack.c.bf16 %v1095, %v1085
  %v1146 = vpack.c.bf16 %v1096, %v1086
  %v1147 = vpack.c.bf16 %v1097, %v1087
  %v1148 = vpack.c.bf16 %v1098, %v1088
  %v1149 = vpack.c.bf16 %v1099, %v1089
  %v1150 = vpack.c.bf16 %v1100, %v1090
  %v1151 = vpack.c.bf16 %v1101, %v1101
  %v1152 = vpack.c.bf16 %v1102, %v1102
  %v1153 = vpack.c.bf16 %v1103, %v1103
  %v1154 = vpack.c.bf16 %v1104, %v1104
  %v1155 = vpack.c.bf16 %v1105, %v1105
  %v1156 = vpack.c.bf16 %v1106, %v1106
  %v1157 = vpack.c.bf16 %v1107, %v1107
  %v1158 = vpack.c.bf16 %v1108, %v1108
  %v1159 = vpack.c.bf16 %v1109, %v1109
  %v1160 = vpack.c.bf16 %v1110, %v1110
  %v1161 = vld [vmem:[%s3] sm:$0xf]
  %v1162 = vld [vmem:[%s3 + $0x4] sm:$0xf]
  %v1163 = vld [vmem:[%s3 + $0x8] sm:$0xf]
  %v1164 = vld [vmem:[%s3 + $0xc] sm:$0xf]
  %v1165 = vld [vmem:[%s3 + $0x10] sm:$0xf]
  %v1166 = vld [vmem:[%s3 + $0x14] sm:$0xf]
  %v1167 = vld [vmem:[%s3 + $0x18] sm:$0xf]
  %v1168 = vld [vmem:[%s3 + $0x1c] sm:$0xf]
  %v1169 = vld [vmem:[%s3 + $0x20] sm:$0xf]
  %v1170 = vld [vmem:[%s3 + $0x24] sm:$0xf]
  %v1171 = vld [vmem:[%s3 + $0x28] sm:$0xf]
  %v1172 = vld [vmem:[%s3 + $0x2c] sm:$0xf]
  %v1173 = vld [vmem:[%s3 + $0x30] sm:$0xf]
  %v1174 = vld [vmem:[%s3 + $0x34] sm:$0xf]
  %v1175 = vld [vmem:[%s3 + $0x38] sm:$0xf]
  %v1176 = vld [vmem:[%s3 + $0x3c] sm:$0xf]
  %v1177 = vld [vmem:[%s3 + $0x40] sm:$0xf]
  %v1178 = vld [vmem:[%s3 + $0x44] sm:$0xf]
  %v1179 = vld [vmem:[%s3 + $0x48] sm:$0xf]
  %v1180 = vld [vmem:[%s3 + $0x4c] sm:$0xf]
  %v1181 = vld [vmem:[%s3 + $0x50] sm:$0xf]
  %v1182 = vld [vmem:[%s3 + $0x54] sm:$0xf]
  %v1183 = vld [vmem:[%s3 + $0x58] sm:$0xf]
  %v1184 = vld [vmem:[%s3 + $0x5c] sm:$0xf]
  %v1185 = vld [vmem:[%s3 + $0x60] sm:$0xf]
  %v1186 = vld [vmem:[%s3 + $0x64] sm:$0xf]
  %v1187 = vld [vmem:[%s3 + $0x68] sm:$0xf]
  %v1188 = vld [vmem:[%s3 + $0x6c] sm:$0xf]
  %v1189 = vld [vmem:[%s3 + $0x70] sm:$0xf]
  %v1190 = vld [vmem:[%s3 + $0x74] sm:$0xf]
  %v1191 = vld [vmem:[%s3 + $0x78] sm:$0xf]
  %v1192 = vld [vmem:[%s3 + $0x7c] sm:$0xf]
  %v1193 = vld [vmem:[%s3 + $0x80] sm:$0xf]
  %v1194 = vld [vmem:[%s3 + $0x84] sm:$0xf]
  %v1195 = vld [vmem:[%s3 + $0x88] sm:$0xf]
  %v1196 = vld [vmem:[%s3 + $0x8c] sm:$0xf]
  %v1197 = vld [vmem:[%s3 + $0x90] sm:$0xf]
  %v1198 = vld [vmem:[%s3 + $0x94] sm:$0xf]
  %v1199 = vld [vmem:[%s3 + $0x98] sm:$0xf]
  %v1200 = vld [vmem:[%s3 + $0x9c] sm:$0xf]
  %v1201 = vld [vmem:[%s3 + $0xa0] sm:$0xf]
  %v1202 = vld [vmem:[%s3 + $0xa4] sm:$0xf]
  %v1203 = vld [vmem:[%s3 + $0xa8] sm:$0xf]
  %v1204 = vld [vmem:[%s3 + $0xac] sm:$0xf]
  %v1205 = vld [vmem:[%s3 + $0xb0] sm:$0xf]
  %v1206 = vld [vmem:[%s3 + $0xb4] sm:$0xf]
  %v1207 = vld [vmem:[%s3 + $0xb8] sm:$0xf]
  %v1208 = vld [vmem:[%s3 + $0xbc] sm:$0xf]
  %v1209 = vld [vmem:[%s3 + $0xc0] sm:$0xf]
  %v1210 = vld [vmem:[%s3 + $0xc4] sm:$0xf]
  %v1211 = vld [vmem:[%s3 + $0xc8] sm:$0xf]
  %v1212 = vld [vmem:[%s3 + $0xcc] sm:$0xf]
  %v1213 = vld [vmem:[%s3 + $0xd0] sm:$0xf]
  %v1214 = vld [vmem:[%s3 + $0xd4] sm:$0xf]
  %v1215 = vld [vmem:[%s3 + $0xd8] sm:$0xf]
  %v1216 = vld [vmem:[%s3 + $0xdc] sm:$0xf]
  %v1217 = vld [vmem:[%s3 + $0xe0] sm:$0xf]
  %v1218 = vld [vmem:[%s3 + $0xe4] sm:$0xf]
  %v1219 = vld [vmem:[%s3 + $0xe8] sm:$0xf]
  %v1220 = vld [vmem:[%s3 + $0xec] sm:$0xf]
  %v1221 = vld [vmem:[%s3 + $0xf0] sm:$0xf]
  %v1222 = vld [vmem:[%s3 + $0xf4] sm:$0xf]
  %v1223 = vld [vmem:[%s3 + $0xf8] sm:$0xf]
  %v1224 = vld [vmem:[%s3 + $0xfc] sm:$0xf]
  %v1225 = vld [vmem:[%s3 + $0x100] sm:$0xf]
  %v1226 = vld [vmem:[%s3 + $0x104] sm:$0xf]
  %v1227 = vld [vmem:[%s3 + $0x108] sm:$0xf]
  %v1228 = vld [vmem:[%s3 + $0x10c] sm:$0xf]
  %v1229 = vld [vmem:[%s3 + $0x110] sm:$0xf]
  %v1230 = vld [vmem:[%s3 + $0x114] sm:$0xf]
  %v1231 = vld [vmem:[%s3 + $0x118] sm:$0xf]
  %v1232 = vld [vmem:[%s3 + $0x11c] sm:$0xf]
  %v1233 = vld [vmem:[%s3 + $0x120] sm:$0xf]
  %v1234 = vld [vmem:[%s3 + $0x124] sm:$0xf]
  %v1235 = vld [vmem:[%s3 + $0x128] sm:$0xf]
  %v1236 = vld [vmem:[%s3 + $0x12c] sm:$0xf]
  %v1237 = vld [vmem:[%s3 + $0x130] sm:$0xf]
  %v1238 = vld [vmem:[%s3 + $0x134] sm:$0xf]
  %v1239 = vld [vmem:[%s3 + $0x138] sm:$0xf]
  %v1240 = vld [vmem:[%s3 + $0x13c] sm:$0xf]
  %v1241 = vld [vmem:[%s3 + $0x140] sm:$0xf]
  %v1242 = vld [vmem:[%s3 + $0x144] sm:$0xf]
  %v1243 = vld [vmem:[%s3 + $0x148] sm:$0xf]
  %v1244 = vld [vmem:[%s3 + $0x14c] sm:$0xf]
  %v1245 = vld [vmem:[%s3 + $0x150] sm:$0xf]
  %v1246 = vld [vmem:[%s3 + $0x154] sm:$0xf]
  %v1247 = vld [vmem:[%s3 + $0x158] sm:$0xf]
  %v1248 = vld [vmem:[%s3 + $0x15c] sm:$0xf]
  %v1249 = vld [vmem:[%s3 + $0x160] sm:$0xf]
  %v1250 = vld [vmem:[%s3 + $0x164] sm:$0xf]
  %v1251 = vld [vmem:[%s3 + $0x168] sm:$0xf]
  %v1252 = vld [vmem:[%s3 + $0x16c] sm:$0xf]
  %v1253 = vld [vmem:[%s3 + $0x170] sm:$0xf]
  %v1254 = vld [vmem:[%s3 + $0x174] sm:$0xf]
  %v1255 = vld [vmem:[%s3 + $0x178] sm:$0xf]
  %v1256 = vld [vmem:[%s3 + $0x17c] sm:$0xf]
  %v1257 = vld [vmem:[%s3 + $0x180] sm:$0xf]
  %v1258 = vld [vmem:[%s3 + $0x184] sm:$0xf]
  %v1259 = vld [vmem:[%s3 + $0x188] sm:$0xf]
  %v1260 = vld [vmem:[%s3 + $0x18c] sm:$0xf]
  %v1261 = vld [vmem:[%s3 + $0x190] sm:$0xf]
  %v1262 = vld [vmem:[%s3 + $0x194] sm:$0xf]
  %v1263 = vld [vmem:[%s3 + $0x198] sm:$0xf]
  %v1264 = vld [vmem:[%s3 + $0x19c] sm:$0xf]
  %v1265 = vld [vmem:[%s3 + $0x1a0] sm:$0xf]
  %v1266 = vld [vmem:[%s3 + $0x1a4] sm:$0xf]
  %v1267 = vld [vmem:[%s3 + $0x1a8] sm:$0xf]
  %v1268 = vld [vmem:[%s3 + $0x1ac] sm:$0xf]
  %v1269 = vld [vmem:[%s3 + $0x1b0] sm:$0xf]
  %v1270 = vld [vmem:[%s3 + $0x1b4] sm:$0xf]
  %v1271 = vld [vmem:[%s3 + $0x1b8] sm:$0xf]
  %v1272 = vld [vmem:[%s3 + $0x1bc] sm:$0xf]
  %v1273 = vld [vmem:[%s3 + $0x1c0] sm:$0xf]
  %v1274 = vld [vmem:[%s3 + $0x1c4] sm:$0xf]
  %v1275 = vld [vmem:[%s3 + $0x1c8] sm:$0xf]
  %v1276 = vld [vmem:[%s3 + $0x1cc] sm:$0xf]
  %v1277 = vld [vmem:[%s3 + $0x1d0] sm:$0xf]
  %v1278 = vld [vmem:[%s3 + $0x1d4] sm:$0xf]
  %v1279 = vld [vmem:[%s3 + $0x1d8] sm:$0xf]
  %v1280 = vld [vmem:[%s3 + $0x1dc] sm:$0xf]
  %v1281 = vld [vmem:[%s3 + $0x1e0] sm:$0xf]
  %v1282 = vld [vmem:[%s3 + $0x1e4] sm:$0xf]
  %v1283 = vld [vmem:[%s3 + $0x1e8] sm:$0xf]
  %v1284 = vld [vmem:[%s3 + $0x1ec] sm:$0xf]
  %v1285 = vld [vmem:[%s3 + $0x1f0] sm:$0xf]
  %v1286 = vld [vmem:[%s3 + $0x1f4] sm:$0xf]
  %v1287 = vld [vmem:[%s3 + $0x1f8] sm:$0xf]
  %v1288 = vld [vmem:[%s3 + $0x1fc] sm:$0xf]
  %v1289 = vld [vmem:[%s3 + $0x200] sm:$0xf]
  %v1290 = vld [vmem:[%s3 + $0x204] sm:$0xf]
  %v1291 = vld [vmem:[%s3 + $0x208] sm:$0xf]
  %v1292 = vld [vmem:[%s3 + $0x20c] sm:$0xf]
  %v1293 = vld [vmem:[%s3 + $0x210] sm:$0xf]
  %v1294 = vld [vmem:[%s3 + $0x214] sm:$0xf]
  %v1295 = vld [vmem:[%s3 + $0x218] sm:$0xf]
  %v1296 = vld [vmem:[%s3 + $0x21c] sm:$0xf]
  %v1297 = vld [vmem:[%s3 + $0x220] sm:$0xf]
  %v1298 = vld [vmem:[%s3 + $0x224] sm:$0xf]
  %v1299 = vld [vmem:[%s3 + $0x228] sm:$0xf]
  %v1300 = vld [vmem:[%s3 + $0x22c] sm:$0xf]
  %v1301 = vld [vmem:[%s3 + $0x230] sm:$0xf]
  %v1302 = vld [vmem:[%s3 + $0x234] sm:$0xf]
  %v1303 = vld [vmem:[%s3 + $0x238] sm:$0xf]
  %v1304 = vld [vmem:[%s3 + $0x23c] sm:$0xf]
  %v1305 = vld [vmem:[%s3 + $0x240] sm:$0xf]
  %v1306 = vld [vmem:[%s3 + $0x244] sm:$0xf]
  %v1307 = vld [vmem:[%s3 + $0x248] sm:$0xf]
  %v1308 = vld [vmem:[%s3 + $0x24c] sm:$0xf]
  %v1309 = vld [vmem:[%s3 + $0x250] sm:$0xf]
  %v1310 = vld [vmem:[%s3 + $0x254] sm:$0xf]
  %v1311 = vld [vmem:[%s3 + $0x258] sm:$0xf]
  %v1312 = vld [vmem:[%s3 + $0x25c] sm:$0xf]
  %v1313 = vld [vmem:[%s3 + $0x260] sm:$0xf]
  %v1314 = vld [vmem:[%s3 + $0x264] sm:$0xf]
  %v1315 = vld [vmem:[%s3 + $0x268] sm:$0xf]
  %v1316 = vld [vmem:[%s3 + $0x26c] sm:$0xf]
  %v1317 = vld [vmem:[%s3 + $0x270] sm:$0xf]
  %v1318 = vld [vmem:[%s3 + $0x274] sm:$0xf]
  %v1319 = vld [vmem:[%s3 + $0x278] sm:$0xf]
  %v1320 = vld [vmem:[%s3 + $0x27c] sm:$0xf]
  %v1321 = vld [vmem:[%s4] sm:$0x1]
  %v1323 = vlaneseq
  %v1324 = vshrl.u32 %v1323, 7
  %v1325 = vsub.s32 0, %v1324
  %v1326 = vrot.slane %v1321, %v1325
  %v1488 = vunpack.c.l.b16 %v1161
  %v1489 = vunpack.c.l.b16 %v1162
  %v1490 = vunpack.c.l.b16 %v1163
  %v1491 = vunpack.c.l.b16 %v1164
  %v1492 = vunpack.c.l.b16 %v1165
  %v1493 = vunpack.c.l.b16 %v1166
  %v1494 = vunpack.c.l.b16 %v1167
  %v1495 = vunpack.c.l.b16 %v1168
  %v1496 = vunpack.c.l.b16 %v1169
  %v1497 = vunpack.c.l.b16 %v1170
  %v1498 = vunpack.c.l.b16 %v1171
  %v1499 = vunpack.c.l.b16 %v1172
  %v1500 = vunpack.c.l.b16 %v1173
  %v1501 = vunpack.c.l.b16 %v1174
  %v1502 = vunpack.c.l.b16 %v1175
  %v1503 = vunpack.c.l.b16 %v1176
  %v1504 = vunpack.c.l.b16 %v1177
  %v1505 = vunpack.c.l.b16 %v1178
  %v1506 = vunpack.c.l.b16 %v1179
  %v1507 = vunpack.c.l.b16 %v1180
  %v1508 = vunpack.c.l.b16 %v1181
  %v1509 = vunpack.c.l.b16 %v1182
  %v1510 = vunpack.c.l.b16 %v1183
  %v1511 = vunpack.c.l.b16 %v1184
  %v1512 = vunpack.c.l.b16 %v1185
  %v1513 = vunpack.c.l.b16 %v1186
  %v1514 = vunpack.c.l.b16 %v1187
  %v1515 = vunpack.c.l.b16 %v1188
  %v1516 = vunpack.c.l.b16 %v1189
  %v1517 = vunpack.c.l.b16 %v1190
  %v1518 = vunpack.c.l.b16 %v1191
  %v1519 = vunpack.c.l.b16 %v1192
  %v1520 = vunpack.c.l.b16 %v1193
  %v1521 = vunpack.c.l.b16 %v1194
  %v1522 = vunpack.c.l.b16 %v1195
  %v1523 = vunpack.c.l.b16 %v1196
  %v1524 = vunpack.c.l.b16 %v1197
  %v1525 = vunpack.c.l.b16 %v1198
  %v1526 = vunpack.c.l.b16 %v1199
  %v1527 = vunpack.c.l.b16 %v1200
  %v1528 = vunpack.c.l.b16 %v1201
  %v1529 = vunpack.c.l.b16 %v1202
  %v1530 = vunpack.c.l.b16 %v1203
  %v1531 = vunpack.c.l.b16 %v1204
  %v1532 = vunpack.c.l.b16 %v1205
  %v1533 = vunpack.c.l.b16 %v1206
  %v1534 = vunpack.c.l.b16 %v1207
  %v1535 = vunpack.c.l.b16 %v1208
  %v1536 = vunpack.c.l.b16 %v1209
  %v1537 = vunpack.c.l.b16 %v1210
  %v1538 = vunpack.c.l.b16 %v1211
  %v1539 = vunpack.c.l.b16 %v1212
  %v1540 = vunpack.c.l.b16 %v1213
  %v1541 = vunpack.c.l.b16 %v1214
  %v1542 = vunpack.c.l.b16 %v1215
  %v1543 = vunpack.c.l.b16 %v1216
  %v1544 = vunpack.c.l.b16 %v1217
  %v1545 = vunpack.c.l.b16 %v1218
  %v1546 = vunpack.c.l.b16 %v1219
  %v1547 = vunpack.c.l.b16 %v1220
  %v1548 = vunpack.c.l.b16 %v1221
  %v1549 = vunpack.c.l.b16 %v1222
  %v1550 = vunpack.c.l.b16 %v1223
  %v1551 = vunpack.c.l.b16 %v1224
  %v1552 = vunpack.c.l.b16 %v1225
  %v1553 = vunpack.c.l.b16 %v1226
  %v1554 = vunpack.c.l.b16 %v1227
  %v1555 = vunpack.c.l.b16 %v1228
  %v1556 = vunpack.c.l.b16 %v1229
  %v1557 = vunpack.c.l.b16 %v1230
  %v1558 = vunpack.c.l.b16 %v1231
  %v1559 = vunpack.c.l.b16 %v1232
  %v1560 = vunpack.c.l.b16 %v1233
  %v1561 = vunpack.c.l.b16 %v1234
  %v1562 = vunpack.c.l.b16 %v1235
  %v1563 = vunpack.c.l.b16 %v1236
  %v1564 = vunpack.c.l.b16 %v1237
  %v1565 = vunpack.c.l.b16 %v1238
  %v1566 = vunpack.c.l.b16 %v1239
  %v1567 = vunpack.c.l.b16 %v1240
  %v1568 = vunpack.c.l.b16 %v1241
  %v1569 = vunpack.c.l.b16 %v1242
  %v1570 = vunpack.c.l.b16 %v1243
  %v1571 = vunpack.c.l.b16 %v1244
  %v1572 = vunpack.c.l.b16 %v1245
  %v1573 = vunpack.c.l.b16 %v1246
  %v1574 = vunpack.c.l.b16 %v1247
  %v1575 = vunpack.c.l.b16 %v1248
  %v1576 = vunpack.c.l.b16 %v1249
  %v1577 = vunpack.c.l.b16 %v1250
  %v1578 = vunpack.c.l.b16 %v1251
  %v1579 = vunpack.c.l.b16 %v1252
  %v1580 = vunpack.c.l.b16 %v1253
  %v1581 = vunpack.c.l.b16 %v1254
  %v1582 = vunpack.c.l.b16 %v1255
  %v1583 = vunpack.c.l.b16 %v1256
  %v1584 = vunpack.c.l.b16 %v1257
  %v1585 = vunpack.c.l.b16 %v1258
  %v1586 = vunpack.c.l.b16 %v1259
  %v1587 = vunpack.c.l.b16 %v1260
  %v1588 = vunpack.c.l.b16 %v1261
  %v1589 = vunpack.c.l.b16 %v1262
  %v1590 = vunpack.c.l.b16 %v1263
  %v1591 = vunpack.c.l.b16 %v1264
  %v1592 = vunpack.c.l.b16 %v1265
  %v1593 = vunpack.c.l.b16 %v1266
  %v1594 = vunpack.c.l.b16 %v1267
  %v1595 = vunpack.c.l.b16 %v1268
  %v1596 = vunpack.c.l.b16 %v1269
  %v1597 = vunpack.c.l.b16 %v1270
  %v1598 = vunpack.c.l.b16 %v1271
  %v1599 = vunpack.c.l.b16 %v1272
  %v1600 = vunpack.c.l.b16 %v1273
  %v1601 = vunpack.c.l.b16 %v1274
  %v1602 = vunpack.c.l.b16 %v1275
  %v1603 = vunpack.c.l.b16 %v1276
  %v1604 = vunpack.c.l.b16 %v1277
  %v1605 = vunpack.c.l.b16 %v1278
  %v1606 = vunpack.c.l.b16 %v1279
  %v1607 = vunpack.c.l.b16 %v1280
  %v1608 = vunpack.c.l.b16 %v1281
  %v1609 = vunpack.c.l.b16 %v1282
  %v1610 = vunpack.c.l.b16 %v1283
  %v1611 = vunpack.c.l.b16 %v1284
  %v1612 = vunpack.c.l.b16 %v1285
  %v1613 = vunpack.c.l.b16 %v1286
  %v1614 = vunpack.c.l.b16 %v1287
  %v1615 = vunpack.c.l.b16 %v1288
  %v1616 = vunpack.c.l.b16 %v1289
  %v1617 = vunpack.c.l.b16 %v1290
  %v1618 = vunpack.c.l.b16 %v1291
  %v1619 = vunpack.c.l.b16 %v1292
  %v1620 = vunpack.c.l.b16 %v1293
  %v1621 = vunpack.c.l.b16 %v1294
  %v1622 = vunpack.c.l.b16 %v1295
  %v1623 = vunpack.c.l.b16 %v1296
  %v1624 = vunpack.c.l.b16 %v1297
  %v1625 = vunpack.c.l.b16 %v1298
  %v1626 = vunpack.c.l.b16 %v1299
  %v1627 = vunpack.c.l.b16 %v1300
  %v1628 = vunpack.c.l.b16 %v1301
  %v1629 = vunpack.c.l.b16 %v1302
  %v1630 = vunpack.c.l.b16 %v1303
  %v1631 = vunpack.c.l.b16 %v1304
  %v1632 = vunpack.c.l.b16 %v1305
  %v1633 = vunpack.c.l.b16 %v1306
  %v1634 = vunpack.c.l.b16 %v1307
  %v1635 = vunpack.c.l.b16 %v1308
  %v1636 = vunpack.c.l.b16 %v1309
  %v1637 = vunpack.c.l.b16 %v1310
  %v1638 = vunpack.c.l.b16 %v1311
  %v1639 = vunpack.c.l.b16 %v1312
  %v1640 = vunpack.c.l.b16 %v1313
  %v1641 = vunpack.c.l.b16 %v1314
  %v1642 = vunpack.c.l.b16 %v1315
  %v1643 = vunpack.c.l.b16 %v1316
  %v1644 = vunpack.c.l.b16 %v1317
  %v1645 = vunpack.c.l.b16 %v1318
  %v1646 = vunpack.c.l.b16 %v1319
  %v1647 = vunpack.c.l.b16 %v1320
  %v1648 = vpack.c.b16 %v1489, %v1488
  %v1649 = vpack.c.b16 %v1491, %v1490
  %v1650 = vpack.c.b16 %v1493, %v1492
  %v1651 = vpack.c.b16 %v1495, %v1494
  %v1652 = vpack.c.b16 %v1497, %v1496
  %v1653 = vpack.c.b16 %v1499, %v1498
  %v1654 = vpack.c.b16 %v1501, %v1500
  %v1655 = vpack.c.b16 %v1503, %v1502
  %v1656 = vpack.c.b16 %v1505, %v1504
  %v1657 = vpack.c.b16 %v1507, %v1506
  %v1658 = vpack.c.b16 %v1509, %v1508
  %v1659 = vpack.c.b16 %v1511, %v1510
  %v1660 = vpack.c.b16 %v1513, %v1512
  %v1661 = vpack.c.b16 %v1515, %v1514
  %v1662 = vpack.c.b16 %v1517, %v1516
  %v1663 = vpack.c.b16 %v1519, %v1518
  %v1664 = vpack.c.b16 %v1521, %v1520
  %v1665 = vpack.c.b16 %v1523, %v1522
  %v1666 = vpack.c.b16 %v1525, %v1524
  %v1667 = vpack.c.b16 %v1527, %v1526
  %v1668 = vpack.c.b16 %v1529, %v1528
  %v1669 = vpack.c.b16 %v1531, %v1530
  %v1670 = vpack.c.b16 %v1533, %v1532
  %v1671 = vpack.c.b16 %v1535, %v1534
  %v1672 = vpack.c.b16 %v1537, %v1536
  %v1673 = vpack.c.b16 %v1539, %v1538
  %v1674 = vpack.c.b16 %v1541, %v1540
  %v1675 = vpack.c.b16 %v1543, %v1542
  %v1676 = vpack.c.b16 %v1545, %v1544
  %v1677 = vpack.c.b16 %v1547, %v1546
  %v1678 = vpack.c.b16 %v1549, %v1548
  %v1679 = vpack.c.b16 %v1551, %v1550
  %v1680 = vpack.c.b16 %v1553, %v1552
  %v1681 = vpack.c.b16 %v1555, %v1554
  %v1682 = vpack.c.b16 %v1557, %v1556
  %v1683 = vpack.c.b16 %v1559, %v1558
  %v1684 = vpack.c.b16 %v1561, %v1560
  %v1685 = vpack.c.b16 %v1563, %v1562
  %v1686 = vpack.c.b16 %v1565, %v1564
  %v1687 = vpack.c.b16 %v1567, %v1566
  %v1688 = vpack.c.b16 %v1569, %v1568
  %v1689 = vpack.c.b16 %v1571, %v1570
  %v1690 = vpack.c.b16 %v1573, %v1572
  %v1691 = vpack.c.b16 %v1575, %v1574
  %v1692 = vpack.c.b16 %v1577, %v1576
  %v1693 = vpack.c.b16 %v1579, %v1578
  %v1694 = vpack.c.b16 %v1581, %v1580
  %v1695 = vpack.c.b16 %v1583, %v1582
  %v1696 = vpack.c.b16 %v1585, %v1584
  %v1697 = vpack.c.b16 %v1587, %v1586
  %v1698 = vpack.c.b16 %v1589, %v1588
  %v1699 = vpack.c.b16 %v1591, %v1590
  %v1700 = vpack.c.b16 %v1593, %v1592
  %v1701 = vpack.c.b16 %v1595, %v1594
  %v1702 = vpack.c.b16 %v1597, %v1596
  %v1703 = vpack.c.b16 %v1599, %v1598
  %v1704 = vpack.c.b16 %v1601, %v1600
  %v1705 = vpack.c.b16 %v1603, %v1602
  %v1706 = vpack.c.b16 %v1605, %v1604
  %v1707 = vpack.c.b16 %v1607, %v1606
  %v1708 = vpack.c.b16 %v1609, %v1608
  %v1709 = vpack.c.b16 %v1611, %v1610
  %v1710 = vpack.c.b16 %v1613, %v1612
  %v1711 = vpack.c.b16 %v1615, %v1614
  %v1712 = vpack.c.b16 %v1617, %v1616
  %v1713 = vpack.c.b16 %v1619, %v1618
  %v1714 = vpack.c.b16 %v1621, %v1620
  %v1715 = vpack.c.b16 %v1623, %v1622
  %v1716 = vpack.c.b16 %v1625, %v1624
  %v1717 = vpack.c.b16 %v1627, %v1626
  %v1718 = vpack.c.b16 %v1629, %v1628
  %v1719 = vpack.c.b16 %v1631, %v1630
  %v1720 = vpack.c.b16 %v1633, %v1632
  %v1721 = vpack.c.b16 %v1635, %v1634
  %v1722 = vpack.c.b16 %v1637, %v1636
  %v1723 = vpack.c.b16 %v1639, %v1638
  %v1724 = vpack.c.b16 %v1641, %v1640
  %v1725 = vpack.c.b16 %v1643, %v1642
  %v1726 = vpack.c.b16 %v1645, %v1644
  %v1727 = vpack.c.b16 %v1647, %v1646
  %1808 = vmatprep.subr.bf16.mxu0 0
  %1809 = vmatpush1.bf16.msra.mxu0 %v1648
  %1810 = vmatprep.subr.bf16.mxu0 0
  %1811 = vmatpush1.bf16.msra.mxu0 %v1649
  %1812 = vmatprep.subr.bf16.mxu0 0
  %1813 = vmatpush1.bf16.msra.mxu0 %v1650
  %1814 = vmatprep.subr.bf16.mxu0 0
  %1815 = vmatpush1.bf16.msra.mxu0 %v1651
  %1816 = vmatprep.subr.bf16.mxu0 0
  %1817 = vmatpush1.bf16.msra.mxu0 %v1652
  %1818 = vmatprep.subr.bf16.mxu0 0
  %1819 = vmatpush1.bf16.msra.mxu0 %v1653
  %1820 = vmatprep.subr.bf16.mxu0 0
  %1821 = vmatpush1.bf16.msra.mxu0 %v1654
  %1822 = vmatprep.subr.bf16.mxu0 0
  %1823 = vmatpush1.bf16.msra.mxu0 %v1655
  %1824 = vmatprep.subr.bf16.mxu0 0
  %1825 = vmatpush1.bf16.msra.mxu0 %v1656
  %1826 = vmatprep.subr.bf16.mxu0 0
  %1827 = vmatpush1.bf16.msra.mxu0 %v1657
  %1828 = vmatprep.subr.bf16.mxu0 0
  %1829 = vmatpush1.bf16.msra.mxu0 %v1658
  %1830 = vmatprep.subr.bf16.mxu0 0
  %1831 = vmatpush1.bf16.msra.mxu0 %v1659
  %1832 = vmatprep.subr.bf16.mxu0 0
  %1833 = vmatpush1.bf16.msra.mxu0 %v1660
  %1834 = vmatprep.subr.bf16.mxu0 0
  %1835 = vmatpush1.bf16.msra.mxu0 %v1661
  %1836 = vmatprep.subr.bf16.mxu0 0
  %1837 = vmatpush1.bf16.msra.mxu0 %v1662
  %1838 = vmatprep.subr.bf16.mxu0 0
  %1839 = vmatpush1.bf16.msra.mxu0 %v1663
  %1840 = vmatprep.mubr.bf16.mxu0 %v1112
  %1841 = vmatmul.mubr.bf16.gmra.mrb[0].mxu0 %v1111
  %v1842 = vpop.f32.mrb[0].mxu0
  %v1843 = vadd.f32 %v1326, %v1842
  %v1844 = vpop.f32.mrb[0].mxu0
  %v1845 = vpop.f32.mrb[0].mxu0
  %v1846 = vadd.f32 %v1326, %v1845
  %v1847 = vpop.f32.mrb[0].mxu0
  %1848 = vmatprep.mubr.bf16.mxu0 %v1122
  %1849 = vmatmul.mubr.bf16.gmra.mrb[0].mxu0 %v1121
  %v1850 = vpop.f32.mrb[0].mxu0
  %v1851 = vadd.f32 %v1326, %v1850
  %v1852 = vpop.f32.mrb[0].mxu0
  %v1853 = vpop.f32.mrb[0].mxu0
  %v1854 = vadd.f32 %v1326, %v1853
  %v1855 = vpop.f32.mrb[0].mxu0
  %1856 = vmatprep.mubr.bf16.mxu0 %v1132
  %1857 = vmatmul.mubr.bf16.gmra.mrb[0].mxu0 %v1131
  %v1858 = vpop.f32.mrb[0].mxu0
  %v1859 = vadd.f32 %v1326, %v1858
  %v1860 = vpop.f32.mrb[0].mxu0
  %v1861 = vpop.f32.mrb[0].mxu0
  %v1862 = vadd.f32 %v1326, %v1861
  %v1863 = vpop.f32.mrb[0].mxu0
  %1864 = vmatprep.mubr.bf16.mxu0 %v1142
  %1865 = vmatmul.mubr.bf16.gmra.mrb[0].mxu0 %v1141
  %v1866 = vpop.f32.mrb[0].mxu0
  %v1867 = vadd.f32 %v1326, %v1866
  %v1868 = vpop.f32.mrb[0].mxu0
  %v1869 = vpop.f32.mrb[0].mxu0
  %v1870 = vadd.f32 %v1326, %v1869
  %v1871 = vpop.f32.mrb[0].mxu0
  %1872 = vmatprep.mubr.bf16.mxu0 %v1152
  %1873 = vmatmul.mubr.bf16.gmra.mrb[0].mxu0 %v1151
  %v1874 = vpop.f32.mrb[0].mxu0
  %v1875 = vadd.f32 %v1326, %v1874
  %v1876 = vpop.f32.mrb[0].mxu0
  %v1877 = vpop.f32.mrb[0].mxu0
  %v1878 = vpop.f32.mrb[0].mxu0
  %1879 = vdwg.mxu0
  %1880 = vmatprep.subr.bf16.mxu0 0
  %1881 = vmatpush1.bf16.msra.mxu0 %v1664
  %1882 = vmatprep.subr.bf16.mxu0 0
  %1883 = vmatpush1.bf16.msra.mxu0 %v1665
  %1884 = vmatprep.subr.bf16.mxu0 0
  %1885 = vmatpush1.bf16.msra.mxu0 %v1666
  %1886 = vmatprep.subr.bf16.mxu0 0
  %1887 = vmatpush1.bf16.msra.mxu0 %v1667
  %1888 = vmatprep.subr.bf16.mxu0 0
  %1889 = vmatpush1.bf16.msra.mxu0 %v1668
  %1890 = vmatprep.subr.bf16.mxu0 0
  %1891 = vmatpush1.bf16.msra.mxu0 %v1669
  %1892 = vmatprep.subr.bf16.mxu0 0
  %1893 = vmatpush1.bf16.msra.mxu0 %v1670
  %1894 = vmatprep.subr.bf16.mxu0 0
  %1895 = vmatpush1.bf16.msra.mxu0 %v1671
  %1896 = vmatprep.subr.bf16.mxu0 0
  %1897 = vmatpush1.bf16.msra.mxu0 %v1672
  %1898 = vmatprep.subr.bf16.mxu0 0
  %1899 = vmatpush1.bf16.msra.mxu0 %v1673
  %1900 = vmatprep.subr.bf16.mxu0 0
  %1901 = vmatpush1.bf16.msra.mxu0 %v1674
  %1902 = vmatprep.subr.bf16.mxu0 0
  %1903 = vmatpush1.bf16.msra.mxu0 %v1675
  %1904 = vmatprep.subr.bf16.mxu0 0
  %1905 = vmatpush1.bf16.msra.mxu0 %v1676
  %1906 = vmatprep.subr.bf16.mxu0 0
  %1907 = vmatpush1.bf16.msra.mxu0 %v1677
  %1908 = vmatprep.subr.bf16.mxu0 0
  %1909 = vmatpush1.bf16.msra.mxu0 %v1678
  %1910 = vmatprep.subr.bf16.mxu0 0
  %1911 = vmatpush1.bf16.msra.mxu0 %v1679
  %1912 = vmatprep.mubr.bf16.mxu0 %v1114
  %1913 = vmatmul.mubr.bf16.gmra.mrb[0].mxu0 %v1113
  %v1914 = vpop.f32.mrb[0].mxu0
  %v1915 = vadd.f32 %v1843, %v1914
  %v1916 = vpop.f32.mrb[0].mxu0
  %v1917 = vpop.f32.mrb[0].mxu0
  %v1918 = vadd.f32 %v1846, %v1917
  %v1919 = vpop.f32.mrb[0].mxu0
  %1920 = vmatprep.mubr.bf16.mxu0 %v1124
  %1921 = vmatmul.mubr.bf16.gmra.mrb[0].mxu0 %v1123
  %v1922 = vpop.f32.mrb[0].mxu0
  %v1923 = vadd.f32 %v1851, %v1922
  %v1924 = vpop.f32.mrb[0].mxu0
  %v1925 = vpop.f32.mrb[0].mxu0
  %v1926 = vadd.f32 %v1854, %v1925
  %v1927 = vpop.f32.mrb[0].mxu0
  %1928 = vmatprep.mubr.bf16.mxu0 %v1134
  %1929 = vmatmul.mubr.bf16.gmra.mrb[0].mxu0 %v1133
  %v1930 = vpop.f32.mrb[0].mxu0
  %v1931 = vadd.f32 %v1859, %v1930
  %v1932 = vpop.f32.mrb[0].mxu0
  %v1933 = vpop.f32.mrb[0].mxu0
  %v1934 = vadd.f32 %v1862, %v1933
  %v1935 = vpop.f32.mrb[0].mxu0
  %1936 = vmatprep.mubr.bf16.mxu0 %v1144
  %1937 = vmatmul.mubr.bf16.gmra.mrb[0].mxu0 %v1143
  %v1938 = vpop.f32.mrb[0].mxu0
  %v1939 = vadd.f32 %v1867, %v1938
  %v1940 = vpop.f32.mrb[0].mxu0
  %v1941 = vpop.f32.mrb[0].mxu0
  %v1942 = vadd.f32 %v1870, %v1941
  %v1943 = vpop.f32.mrb[0].mxu0
  %1944 = vmatprep.mubr.bf16.mxu0 %v1154
  %1945 = vmatmul.mubr.bf16.gmra.mrb[0].mxu0 %v1153
  %v1946 = vpop.f32.mrb[0].mxu0
  %v1947 = vadd.f32 %v1875, %v1946
  %v1948 = vpop.f32.mrb[0].mxu0
  %v1949 = vpop.f32.mrb[0].mxu0
  %v1950 = vpop.f32.mrb[0].mxu0
  %1951 = vdwg.mxu0
  %1952 = vmatprep.subr.bf16.mxu0 0
  %1953 = vmatpush1.bf16.msra.mxu0 %v1680
  %1954 = vmatprep.subr.bf16.mxu0 0
  %1955 = vmatpush1.bf16.msra.mxu0 %v1681
  %1956 = vmatprep.subr.bf16.mxu0 0
  %1957 = vmatpush1.bf16.msra.mxu0 %v1682
  %1958 = vmatprep.subr.bf16.mxu0 0
  %1959 = vmatpush1.bf16.msra.mxu0 %v1683
  %1960 = vmatprep.subr.bf16.mxu0 0
  %1961 = vmatpush1.bf16.msra.mxu0 %v1684
  %1962 = vmatprep.subr.bf16.mxu0 0
  %1963 = vmatpush1.bf16.msra.mxu0 %v1685
  %1964 = vmatprep.subr.bf16.mxu0 0
  %1965 = vmatpush1.bf16.msra.mxu0 %v1686
  %1966 = vmatprep.subr.bf16.mxu0 0
  %1967 = vmatpush1.bf16.msra.mxu0 %v1687
  %1968 = vmatprep.subr.bf16.mxu0 0
  %1969 = vmatpush1.bf16.msra.mxu0 %v1688
  %1970 = vmatprep.subr.bf16.mxu0 0
  %1971 = vmatpush1.bf16.msra.mxu0 %v1689
  %1972 = vmatprep.subr.bf16.mxu0 0
  %1973 = vmatpush1.bf16.msra.mxu0 %v1690
  %1974 = vmatprep.subr.bf16.mxu0 0
  %1975 = vmatpush1.bf16.msra.mxu0 %v1691
  %1976 = vmatprep.subr.bf16.mxu0 0
  %1977 = vmatpush1.bf16.msra.mxu0 %v1692
  %1978 = vmatprep.subr.bf16.mxu0 0
  %1979 = vmatpush1.bf16.msra.mxu0 %v1693
  %1980 = vmatprep.subr.bf16.mxu0 0
  %1981 = vmatpush1.bf16.msra.mxu0 %v1694
  %1982 = vmatprep.subr.bf16.mxu0 0
  %1983 = vmatpush1.bf16.msra.mxu0 %v1695
  %1984 = vmatprep.mubr.bf16.mxu0 %v1116
  %1985 = vmatmul.mubr.bf16.gmra.mrb[0].mxu0 %v1115
  %v1986 = vpop.f32.mrb[0].mxu0
  %v1987 = vadd.f32 %v1915, %v1986
  %v1988 = vpop.f32.mrb[0].mxu0
  %v1989 = vpop.f32.mrb[0].mxu0
  %v1990 = vadd.f32 %v1918, %v1989
  %v1991 = vpop.f32.mrb[0].mxu0
  %1992 = vmatprep.mubr.bf16.mxu0 %v1126
  %1993 = vmatmul.mubr.bf16.gmra.mrb[0].mxu0 %v1125
  %v1994 = vpop.f32.mrb[0].mxu0
  %v1995 = vadd.f32 %v1923, %v1994
  %v1996 = vpop.f32.mrb[0].mxu0
  %v1997 = vpop.f32.mrb[0].mxu0
  %v1998 = vadd.f32 %v1926, %v1997
  %v1999 = vpop.f32.mrb[0].mxu0
  %2000 = vmatprep.mubr.bf16.mxu0 %v1136
  %2001 = vmatmul.mubr.bf16.gmra.mrb[0].mxu0 %v1135
  %v2002 = vpop.f32.mrb[0].mxu0
  %v2003 = vadd.f32 %v1931, %v2002
  %v2004 = vpop.f32.mrb[0].mxu0
  %v2005 = vpop.f32.mrb[0].mxu0
  %v2006 = vadd.f32 %v1934, %v2005
  %v2007 = vpop.f32.mrb[0].mxu0
  %2008 = vmatprep.mubr.bf16.mxu0 %v1146
  %2009 = vmatmul.mubr.bf16.gmra.mrb[0].mxu0 %v1145
  %v2010 = vpop.f32.mrb[0].mxu0
  %v2011 = vadd.f32 %v1939, %v2010
  %v2012 = vpop.f32.mrb[0].mxu0
  %v2013 = vpop.f32.mrb[0].mxu0
  %v2014 = vadd.f32 %v1942, %v2013
  %v2015 = vpop.f32.mrb[0].mxu0
  %2016 = vmatprep.mubr.bf16.mxu0 %v1156
  %2017 = vmatmul.mubr.bf16.gmra.mrb[0].mxu0 %v1155
  %v2018 = vpop.f32.mrb[0].mxu0
  %v2019 = vadd.f32 %v1947, %v2018
  %v2020 = vpop.f32.mrb[0].mxu0
  %v2021 = vpop.f32.mrb[0].mxu0
  %v2022 = vpop.f32.mrb[0].mxu0
  %2023 = vdwg.mxu0
  %2024 = vmatprep.subr.bf16.mxu0 0
  %2025 = vmatpush1.bf16.msra.mxu0 %v1696
  %2026 = vmatprep.subr.bf16.mxu0 0
  %2027 = vmatpush1.bf16.msra.mxu0 %v1697
  %2028 = vmatprep.subr.bf16.mxu0 0
  %2029 = vmatpush1.bf16.msra.mxu0 %v1698
  %2030 = vmatprep.subr.bf16.mxu0 0
  %2031 = vmatpush1.bf16.msra.mxu0 %v1699
  %2032 = vmatprep.subr.bf16.mxu0 0
  %2033 = vmatpush1.bf16.msra.mxu0 %v1700
  %2034 = vmatprep.subr.bf16.mxu0 0
  %2035 = vmatpush1.bf16.msra.mxu0 %v1701
  %2036 = vmatprep.subr.bf16.mxu0 0
  %2037 = vmatpush1.bf16.msra.mxu0 %v1702
  %2038 = vmatprep.subr.bf16.mxu0 0
  %2039 = vmatpush1.bf16.msra.mxu0 %v1703
  %2040 = vmatprep.subr.bf16.mxu0 0
  %2041 = vmatpush1.bf16.msra.mxu0 %v1704
  %2042 = vmatprep.subr.bf16.mxu0 0
  %2043 = vmatpush1.bf16.msra.mxu0 %v1705
  %2044 = vmatprep.subr.bf16.mxu0 0
  %2045 = vmatpush1.bf16.msra.mxu0 %v1706
  %2046 = vmatprep.subr.bf16.mxu0 0
  %2047 = vmatpush1.bf16.msra.mxu0 %v1707
  %2048 = vmatprep.subr.bf16.mxu0 0
  %2049 = vmatpush1.bf16.msra.mxu0 %v1708
  %2050 = vmatprep.subr.bf16.mxu0 0
  %2051 = vmatpush1.bf16.msra.mxu0 %v1709
  %2052 = vmatprep.subr.bf16.mxu0 0
  %2053 = vmatpush1.bf16.msra.mxu0 %v1710
  %2054 = vmatprep.subr.bf16.mxu0 0
  %2055 = vmatpush1.bf16.msra.mxu0 %v1711
  %2056 = vmatprep.mubr.bf16.mxu0 %v1118
  %2057 = vmatmul.mubr.bf16.gmra.mrb[0].mxu0 %v1117
  %v2058 = vpop.f32.mrb[0].mxu0
  %v2059 = vadd.f32 %v1987, %v2058
  %v2060 = vpop.f32.mrb[0].mxu0
  %v2061 = vpop.f32.mrb[0].mxu0
  %v2062 = vadd.f32 %v1990, %v2061
  %v2063 = vpop.f32.mrb[0].mxu0
  %2064 = vmatprep.mubr.bf16.mxu0 %v1128
  %2065 = vmatmul.mubr.bf16.gmra.mrb[0].mxu0 %v1127
  %v2066 = vpop.f32.mrb[0].mxu0
  %v2067 = vadd.f32 %v1995, %v2066
  %v2068 = vpop.f32.mrb[0].mxu0
  %v2069 = vpop.f32.mrb[0].mxu0
  %v2070 = vadd.f32 %v1998, %v2069
  %v2071 = vpop.f32.mrb[0].mxu0
  %2072 = vmatprep.mubr.bf16.mxu0 %v1138
  %2073 = vmatmul.mubr.bf16.gmra.mrb[0].mxu0 %v1137
  %v2074 = vpop.f32.mrb[0].mxu0
  %v2075 = vadd.f32 %v2003, %v2074
  %v2076 = vpop.f32.mrb[0].mxu0
  %v2077 = vpop.f32.mrb[0].mxu0
  %v2078 = vadd.f32 %v2006, %v2077
  %v2079 = vpop.f32.mrb[0].mxu0
  %2080 = vmatprep.mubr.bf16.mxu0 %v1148
  %2081 = vmatmul.mubr.bf16.gmra.mrb[0].mxu0 %v1147
  %v2082 = vpop.f32.mrb[0].mxu0
  %v2083 = vadd.f32 %v2011, %v2082
  %v2084 = vpop.f32.mrb[0].mxu0
  %v2085 = vpop.f32.mrb[0].mxu0
  %v2086 = vadd.f32 %v2014, %v2085
  %v2087 = vpop.f32.mrb[0].mxu0
  %2088 = vmatprep.mubr.bf16.mxu0 %v1158
  %2089 = vmatmul.mubr.bf16.gmra.mrb[0].mxu0 %v1157
  %v2090 = vpop.f32.mrb[0].mxu0
  %v2091 = vadd.f32 %v2019, %v2090
  %v2092 = vpop.f32.mrb[0].mxu0
  %v2093 = vpop.f32.mrb[0].mxu0
  %v2094 = vpop.f32.mrb[0].mxu0
  %2095 = vdwg.mxu0
  %2096 = vmatprep.subr.bf16.mxu0 0
  %2097 = vmatpush1.bf16.msra.mxu0 %v1712
  %2098 = vmatprep.subr.bf16.mxu0 0
  %2099 = vmatpush1.bf16.msra.mxu0 %v1713
  %2100 = vmatprep.subr.bf16.mxu0 0
  %2101 = vmatpush1.bf16.msra.mxu0 %v1714
  %2102 = vmatprep.subr.bf16.mxu0 0
  %2103 = vmatpush1.bf16.msra.mxu0 %v1715
  %2104 = vmatprep.subr.bf16.mxu0 0
  %2105 = vmatpush1.bf16.msra.mxu0 %v1716
  %2106 = vmatprep.subr.bf16.mxu0 0
  %2107 = vmatpush1.bf16.msra.mxu0 %v1717
  %2108 = vmatprep.subr.bf16.mxu0 0
  %2109 = vmatpush1.bf16.msra.mxu0 %v1718
  %2110 = vmatprep.subr.bf16.mxu0 0
  %2111 = vmatpush1.bf16.msra.mxu0 %v1719
  %2112 = vmatprep.subr.bf16.mxu0 0
  %2113 = vmatpush1.bf16.msra.mxu0 %v1720
  %2114 = vmatprep.subr.bf16.mxu0 0
  %2115 = vmatpush1.bf16.msra.mxu0 %v1721
  %2116 = vmatprep.subr.bf16.mxu0 0
  %2117 = vmatpush1.bf16.msra.mxu0 %v1722
  %2118 = vmatprep.subr.bf16.mxu0 0
  %2119 = vmatpush1.bf16.msra.mxu0 %v1723
  %2120 = vmatprep.subr.bf16.mxu0 0
  %2121 = vmatpush1.bf16.msra.mxu0 %v1724
  %2122 = vmatprep.subr.bf16.mxu0 0
  %2123 = vmatpush1.bf16.msra.mxu0 %v1725
  %2124 = vmatprep.subr.bf16.mxu0 0
  %2125 = vmatpush1.bf16.msra.mxu0 %v1726
  %2126 = vmatprep.subr.bf16.mxu0 0
  %2127 = vmatpush1.bf16.msra.mxu0 %v1727
  %2128 = vmatprep.mubr.bf16.mxu0 %v1120
  %2129 = vmatmul.mubr.bf16.gmra.mrb[0].mxu0 %v1119
  %v2130 = vpop.f32.mrb[0].mxu0
  %v2131 = vadd.f32 %v2059, %v2130
  %v2132 = vpop.f32.mrb[0].mxu0
  %v2133 = vpop.f32.mrb[0].mxu0
  %v2134 = vadd.f32 %v2062, %v2133
  %v2135 = vpop.f32.mrb[0].mxu0
  %2136 = vmatprep.mubr.bf16.mxu0 %v1130
  %2137 = vmatmul.mubr.bf16.gmra.mrb[0].mxu0 %v1129
  %v2138 = vpop.f32.mrb[0].mxu0
  %v2139 = vadd.f32 %v2067, %v2138
  %v2140 = vpop.f32.mrb[0].mxu0
  %v2141 = vpop.f32.mrb[0].mxu0
  %v2142 = vadd.f32 %v2070, %v2141
  %v2143 = vpop.f32.mrb[0].mxu0
  %2144 = vmatprep.mubr.bf16.mxu0 %v1140
  %2145 = vmatmul.mubr.bf16.gmra.mrb[0].mxu0 %v1139
  %v2146 = vpop.f32.mrb[0].mxu0
  %v2147 = vadd.f32 %v2075, %v2146
  %v2148 = vpop.f32.mrb[0].mxu0
  %v2149 = vpop.f32.mrb[0].mxu0
  %v2150 = vadd.f32 %v2078, %v2149
  %v2151 = vpop.f32.mrb[0].mxu0
  %2152 = vmatprep.mubr.bf16.mxu0 %v1150
  %2153 = vmatmul.mubr.bf16.gmra.mrb[0].mxu0 %v1149
  %v2154 = vpop.f32.mrb[0].mxu0
  %v2155 = vadd.f32 %v2083, %v2154
  %v2156 = vpop.f32.mrb[0].mxu0
  %v2157 = vpop.f32.mrb[0].mxu0
  %v2158 = vadd.f32 %v2086, %v2157
  %v2159 = vpop.f32.mrb[0].mxu0
  %2160 = vmatprep.mubr.bf16.mxu0 %v1160
  %2161 = vmatmul.mubr.bf16.gmra.mrb[0].mxu0 %v1159
  %v2162 = vpop.f32.mrb[0].mxu0
  %v2163 = vadd.f32 %v2091, %v2162
  %v2164 = vpop.f32.mrb[0].mxu0
  %v2165 = vpop.f32.mrb[0].mxu0
  %v2166 = vpop.f32.mrb[0].mxu0
  %2167 = vdwg.mxu0
  %v2168 = vpack.c.bf16 %v2131, %v2131
  %v2169 = vpack.c.bf16 %v2134, %v2134
  %v2170 = vpack.c.bf16 %v2139, %v2139
  %v2171 = vpack.c.bf16 %v2142, %v2142
  %v2172 = vpack.c.bf16 %v2147, %v2147
  %v2173 = vpack.c.bf16 %v2150, %v2150
  %v2174 = vpack.c.bf16 %v2155, %v2155
  %v2175 = vpack.c.bf16 %v2158, %v2158
  %v2176 = vpack.c.bf16 %v2163, %v2163
  %v2177 = vld [vmem:[%s5] sm:$0xf]
  %v2178 = vld [vmem:[%s5 + $0x4] sm:$0xf]
  %v2179 = vld [vmem:[%s5 + $0x8] sm:$0xf]
  %v2180 = vld [vmem:[%s5 + $0xc] sm:$0xf]
  %v2181 = vld [vmem:[%s5 + $0x10] sm:$0xf]
  %v2182 = vld [vmem:[%s5 + $0x14] sm:$0xf]
  %v2183 = vld [vmem:[%s5 + $0x18] sm:$0xf]
  %v2184 = vld [vmem:[%s5 + $0x1c] sm:$0xf]
  %v2185 = vld [vmem:[%s5 + $0x20] sm:$0xf]
  %v2186 = vld [vmem:[%s5 + $0x24] sm:$0xf]
  %v2187 = vld [vmem:[%s5 + $0x28] sm:$0xf]
  %v2188 = vld [vmem:[%s5 + $0x2c] sm:$0xf]
  %v2189 = vld [vmem:[%s5 + $0x30] sm:$0xf]
  %v2190 = vld [vmem:[%s5 + $0x34] sm:$0xf]
  %v2191 = vld [vmem:[%s5 + $0x38] sm:$0xf]
  %v2192 = vld [vmem:[%s5 + $0x3c] sm:$0xf]
  %v2193 = vld [vmem:[%s5 + $0x40] sm:$0xf]
  %v2194 = vld [vmem:[%s5 + $0x44] sm:$0xf]
  %v2195 = vld [vmem:[%s5 + $0x48] sm:$0xf]
  %v2196 = vld [vmem:[%s5 + $0x4c] sm:$0xf]
  %v2197 = vld [vmem:[%s5 + $0x50] sm:$0xf]
  %v2198 = vld [vmem:[%s5 + $0x54] sm:$0xf]
  %v2199 = vld [vmem:[%s5 + $0x58] sm:$0xf]
  %v2200 = vld [vmem:[%s5 + $0x5c] sm:$0xf]
  %v2201 = vld [vmem:[%s5 + $0x60] sm:$0xf]
  %v2202 = vld [vmem:[%s5 + $0x64] sm:$0xf]
  %v2203 = vld [vmem:[%s5 + $0x68] sm:$0xf]
  %v2204 = vld [vmem:[%s5 + $0x6c] sm:$0xf]
  %v2205 = vld [vmem:[%s5 + $0x70] sm:$0xf]
  %v2206 = vld [vmem:[%s5 + $0x74] sm:$0xf]
  %v2207 = vld [vmem:[%s5 + $0x78] sm:$0xf]
  %v2208 = vld [vmem:[%s5 + $0x7c] sm:$0xf]
  %v2209 = vld [vmem:[%s5 + $0x80] sm:$0xf]
  %v2210 = vld [vmem:[%s5 + $0x84] sm:$0xf]
  %v2211 = vld [vmem:[%s5 + $0x88] sm:$0xf]
  %v2212 = vld [vmem:[%s5 + $0x8c] sm:$0xf]
  %v2213 = vld [vmem:[%s5 + $0x90] sm:$0xf]
  %v2214 = vld [vmem:[%s5 + $0x94] sm:$0xf]
  %v2215 = vld [vmem:[%s5 + $0x98] sm:$0xf]
  %v2216 = vld [vmem:[%s5 + $0x9c] sm:$0xf]
  %v2217 = vld [vmem:[%s5 + $0xa0] sm:$0xf]
  %v2218 = vld [vmem:[%s5 + $0xa4] sm:$0xf]
  %v2219 = vld [vmem:[%s5 + $0xa8] sm:$0xf]
  %v2220 = vld [vmem:[%s5 + $0xac] sm:$0xf]
  %v2221 = vld [vmem:[%s5 + $0xb0] sm:$0xf]
  %v2222 = vld [vmem:[%s5 + $0xb4] sm:$0xf]
  %v2223 = vld [vmem:[%s5 + $0xb8] sm:$0xf]
  %v2224 = vld [vmem:[%s5 + $0xbc] sm:$0xf]
  %v2225 = vld [vmem:[%s5 + $0xc0] sm:$0xf]
  %v2226 = vld [vmem:[%s5 + $0xc4] sm:$0xf]
  %v2227 = vld [vmem:[%s5 + $0xc8] sm:$0xf]
  %v2228 = vld [vmem:[%s5 + $0xcc] sm:$0xf]
  %v2229 = vld [vmem:[%s5 + $0xd0] sm:$0xf]
  %v2230 = vld [vmem:[%s5 + $0xd4] sm:$0xf]
  %v2231 = vld [vmem:[%s5 + $0xd8] sm:$0xf]
  %v2232 = vld [vmem:[%s5 + $0xdc] sm:$0xf]
  %v2233 = vld [vmem:[%s5 + $0xe0] sm:$0xf]
  %v2234 = vld [vmem:[%s5 + $0xe4] sm:$0xf]
  %v2235 = vld [vmem:[%s5 + $0xe8] sm:$0xf]
  %v2236 = vld [vmem:[%s5 + $0xec] sm:$0xf]
  %v2237 = vld [vmem:[%s5 + $0xf0] sm:$0xf]
  %v2238 = vld [vmem:[%s5 + $0xf4] sm:$0xf]
  %v2239 = vld [vmem:[%s5 + $0xf8] sm:$0xf]
  %v2240 = vld [vmem:[%s5 + $0xfc] sm:$0xf]
  %v2241 = vld [vmem:[%s5 + $0x100] sm:$0xf]
  %v2242 = vld [vmem:[%s5 + $0x104] sm:$0xf]
  %v2243 = vld [vmem:[%s5 + $0x108] sm:$0xf]
  %v2244 = vld [vmem:[%s5 + $0x10c] sm:$0xf]
  %v2245 = vld [vmem:[%s5 + $0x110] sm:$0xf]
  %v2246 = vld [vmem:[%s5 + $0x114] sm:$0xf]
  %v2247 = vld [vmem:[%s5 + $0x118] sm:$0xf]
  %v2248 = vld [vmem:[%s5 + $0x11c] sm:$0xf]
  %v2249 = vld [vmem:[%s5 + $0x120] sm:$0xf]
  %v2250 = vld [vmem:[%s5 + $0x124] sm:$0xf]
  %v2251 = vld [vmem:[%s5 + $0x128] sm:$0xf]
  %v2252 = vld [vmem:[%s5 + $0x12c] sm:$0xf]
  %v2253 = vld [vmem:[%s5 + $0x130] sm:$0xf]
  %v2254 = vld [vmem:[%s5 + $0x134] sm:$0xf]
  %v2255 = vld [vmem:[%s5 + $0x138] sm:$0xf]
  %v2256 = vld [vmem:[%s5 + $0x13c] sm:$0xf]
  %v2257 = vld [vmem:[%s5 + $0x140] sm:$0xf]
  %v2258 = vld [vmem:[%s5 + $0x144] sm:$0xf]
  %v2259 = vld [vmem:[%s5 + $0x148] sm:$0xf]
  %v2260 = vld [vmem:[%s5 + $0x14c] sm:$0xf]
  %v2261 = vld [vmem:[%s5 + $0x150] sm:$0xf]
  %v2262 = vld [vmem:[%s5 + $0x154] sm:$0xf]
  %v2263 = vld [vmem:[%s5 + $0x158] sm:$0xf]
  %v2264 = vld [vmem:[%s5 + $0x15c] sm:$0xf]
  %v2265 = vld [vmem:[%s5 + $0x160] sm:$0xf]
  %v2266 = vld [vmem:[%s5 + $0x164] sm:$0xf]
  %v2267 = vld [vmem:[%s5 + $0x168] sm:$0xf]
  %v2268 = vld [vmem:[%s5 + $0x16c] sm:$0xf]
  %v2269 = vld [vmem:[%s5 + $0x170] sm:$0xf]
  %v2270 = vld [vmem:[%s5 + $0x174] sm:$0xf]
  %v2271 = vld [vmem:[%s5 + $0x178] sm:$0xf]
  %v2272 = vld [vmem:[%s5 + $0x17c] sm:$0xf]
  %v2273 = vld [vmem:[%s5 + $0x180] sm:$0xf]
  %v2274 = vld [vmem:[%s5 + $0x184] sm:$0xf]
  %v2275 = vld [vmem:[%s5 + $0x188] sm:$0xf]
  %v2276 = vld [vmem:[%s5 + $0x18c] sm:$0xf]
  %v2277 = vld [vmem:[%s5 + $0x190] sm:$0xf]
  %v2278 = vld [vmem:[%s5 + $0x194] sm:$0xf]
  %v2279 = vld [vmem:[%s5 + $0x198] sm:$0xf]
  %v2280 = vld [vmem:[%s5 + $0x19c] sm:$0xf]
  %v2281 = vld [vmem:[%s5 + $0x1a0] sm:$0xf]
  %v2282 = vld [vmem:[%s5 + $0x1a4] sm:$0xf]
  %v2283 = vld [vmem:[%s5 + $0x1a8] sm:$0xf]
  %v2284 = vld [vmem:[%s5 + $0x1ac] sm:$0xf]
  %v2285 = vld [vmem:[%s5 + $0x1b0] sm:$0xf]
  %v2286 = vld [vmem:[%s5 + $0x1b4] sm:$0xf]
  %v2287 = vld [vmem:[%s5 + $0x1b8] sm:$0xf]
  %v2288 = vld [vmem:[%s5 + $0x1bc] sm:$0xf]
  %v2289 = vld [vmem:[%s5 + $0x1c0] sm:$0xf]
  %v2290 = vld [vmem:[%s5 + $0x1c4] sm:$0xf]
  %v2291 = vld [vmem:[%s5 + $0x1c8] sm:$0xf]
  %v2292 = vld [vmem:[%s5 + $0x1cc] sm:$0xf]
  %v2293 = vld [vmem:[%s5 + $0x1d0] sm:$0xf]
  %v2294 = vld [vmem:[%s5 + $0x1d4] sm:$0xf]
  %v2295 = vld [vmem:[%s5 + $0x1d8] sm:$0xf]
  %v2296 = vld [vmem:[%s5 + $0x1dc] sm:$0xf]
  %v2297 = vld [vmem:[%s5 + $0x1e0] sm:$0xf]
  %v2298 = vld [vmem:[%s5 + $0x1e4] sm:$0xf]
  %v2299 = vld [vmem:[%s5 + $0x1e8] sm:$0xf]
  %v2300 = vld [vmem:[%s5 + $0x1ec] sm:$0xf]
  %v2301 = vld [vmem:[%s5 + $0x1f0] sm:$0xf]
  %v2302 = vld [vmem:[%s5 + $0x1f4] sm:$0xf]
  %v2303 = vld [vmem:[%s5 + $0x1f8] sm:$0xf]
  %v2304 = vld [vmem:[%s5 + $0x1fc] sm:$0xf]
  %v2305 = vld [vmem:[%s5 + $0x200] sm:$0xf]
  %v2306 = vld [vmem:[%s5 + $0x204] sm:$0xf]
  %v2307 = vld [vmem:[%s5 + $0x208] sm:$0xf]
  %v2308 = vld [vmem:[%s5 + $0x20c] sm:$0xf]
  %v2309 = vld [vmem:[%s5 + $0x210] sm:$0xf]
  %v2310 = vld [vmem:[%s5 + $0x214] sm:$0xf]
  %v2311 = vld [vmem:[%s5 + $0x218] sm:$0xf]
  %v2312 = vld [vmem:[%s5 + $0x21c] sm:$0xf]
  %v2313 = vld [vmem:[%s5 + $0x220] sm:$0xf]
  %v2314 = vld [vmem:[%s5 + $0x224] sm:$0xf]
  %v2315 = vld [vmem:[%s5 + $0x228] sm:$0xf]
  %v2316 = vld [vmem:[%s5 + $0x22c] sm:$0xf]
  %v2317 = vld [vmem:[%s5 + $0x230] sm:$0xf]
  %v2318 = vld [vmem:[%s5 + $0x234] sm:$0xf]
  %v2319 = vld [vmem:[%s5 + $0x238] sm:$0xf]
  %v2320 = vld [vmem:[%s5 + $0x23c] sm:$0xf]
  %v2321 = vld [vmem:[%s6] sm:$0x1]
  %v2323 = vlaneseq
  %v2324 = vshrl.u32 %v2323, 7
  %v2325 = vsub.s32 0, %v2324
  %v2326 = vrot.slane %v2321, %v2325
  %v2472 = vunpack.c.l.b16 %v2177
  %v2473 = vunpack.c.l.b16 %v2178
  %v2474 = vunpack.c.l.b16 %v2179
  %v2475 = vunpack.c.l.b16 %v2180
  %v2476 = vunpack.c.l.b16 %v2181
  %v2477 = vunpack.c.l.b16 %v2182
  %v2478 = vunpack.c.l.b16 %v2183
  %v2479 = vunpack.c.l.b16 %v2184
  %v2480 = vunpack.c.l.b16 %v2185
  %v2481 = vunpack.c.l.b16 %v2186
  %v2482 = vunpack.c.l.b16 %v2187
  %v2483 = vunpack.c.l.b16 %v2188
  %v2484 = vunpack.c.l.b16 %v2189
  %v2485 = vunpack.c.l.b16 %v2190
  %v2486 = vunpack.c.l.b16 %v2191
  %v2487 = vunpack.c.l.b16 %v2192
  %v2488 = vunpack.c.l.b16 %v2193
  %v2489 = vunpack.c.l.b16 %v2194
  %v2490 = vunpack.c.l.b16 %v2195
  %v2491 = vunpack.c.l.b16 %v2196
  %v2492 = vunpack.c.l.b16 %v2197
  %v2493 = vunpack.c.l.b16 %v2198
  %v2494 = vunpack.c.l.b16 %v2199
  %v2495 = vunpack.c.l.b16 %v2200
  %v2496 = vunpack.c.l.b16 %v2201
  %v2497 = vunpack.c.l.b16 %v2202
  %v2498 = vunpack.c.l.b16 %v2203
  %v2499 = vunpack.c.l.b16 %v2204
  %v2500 = vunpack.c.l.b16 %v2205
  %v2501 = vunpack.c.l.b16 %v2206
  %v2502 = vunpack.c.l.b16 %v2207
  %v2503 = vunpack.c.l.b16 %v2208
  %v2504 = vunpack.c.l.b16 %v2209
  %v2505 = vunpack.c.l.b16 %v2210
  %v2506 = vunpack.c.l.b16 %v2211
  %v2507 = vunpack.c.l.b16 %v2212
  %v2508 = vunpack.c.l.b16 %v2213
  %v2509 = vunpack.c.l.b16 %v2214
  %v2510 = vunpack.c.l.b16 %v2215
  %v2511 = vunpack.c.l.b16 %v2216
  %v2512 = vunpack.c.l.b16 %v2217
  %v2513 = vunpack.c.l.b16 %v2218
  %v2514 = vunpack.c.l.b16 %v2219
  %v2515 = vunpack.c.l.b16 %v2220
  %v2516 = vunpack.c.l.b16 %v2221
  %v2517 = vunpack.c.l.b16 %v2222
  %v2518 = vunpack.c.l.b16 %v2223
  %v2519 = vunpack.c.l.b16 %v2224
  %v2520 = vunpack.c.l.b16 %v2225
  %v2521 = vunpack.c.l.b16 %v2226
  %v2522 = vunpack.c.l.b16 %v2227
  %v2523 = vunpack.c.l.b16 %v2228
  %v2524 = vunpack.c.l.b16 %v2229
  %v2525 = vunpack.c.l.b16 %v2230
  %v2526 = vunpack.c.l.b16 %v2231
  %v2527 = vunpack.c.l.b16 %v2232
  %v2528 = vunpack.c.l.b16 %v2233
  %v2529 = vunpack.c.l.b16 %v2234
  %v2530 = vunpack.c.l.b16 %v2235
  %v2531 = vunpack.c.l.b16 %v2236
  %v2532 = vunpack.c.l.b16 %v2237
  %v2533 = vunpack.c.l.b16 %v2238
  %v2534 = vunpack.c.l.b16 %v2239
  %v2535 = vunpack.c.l.b16 %v2240
  %v2536 = vunpack.c.l.b16 %v2241
  %v2537 = vunpack.c.l.b16 %v2242
  %v2538 = vunpack.c.l.b16 %v2243
  %v2539 = vunpack.c.l.b16 %v2244
  %v2540 = vunpack.c.l.b16 %v2245
  %v2541 = vunpack.c.l.b16 %v2246
  %v2542 = vunpack.c.l.b16 %v2247
  %v2543 = vunpack.c.l.b16 %v2248
  %v2544 = vunpack.c.l.b16 %v2249
  %v2545 = vunpack.c.l.b16 %v2250
  %v2546 = vunpack.c.l.b16 %v2251
  %v2547 = vunpack.c.l.b16 %v2252
  %v2548 = vunpack.c.l.b16 %v2253
  %v2549 = vunpack.c.l.b16 %v2254
  %v2550 = vunpack.c.l.b16 %v2255
  %v2551 = vunpack.c.l.b16 %v2256
  %v2552 = vunpack.c.l.b16 %v2257
  %v2553 = vunpack.c.l.b16 %v2258
  %v2554 = vunpack.c.l.b16 %v2259
  %v2555 = vunpack.c.l.b16 %v2260
  %v2556 = vunpack.c.l.b16 %v2261
  %v2557 = vunpack.c.l.b16 %v2262
  %v2558 = vunpack.c.l.b16 %v2263
  %v2559 = vunpack.c.l.b16 %v2264
  %v2560 = vunpack.c.l.b16 %v2265
  %v2561 = vunpack.c.l.b16 %v2266
  %v2562 = vunpack.c.l.b16 %v2267
  %v2563 = vunpack.c.l.b16 %v2268
  %v2564 = vunpack.c.l.b16 %v2269
  %v2565 = vunpack.c.l.b16 %v2270
  %v2566 = vunpack.c.l.b16 %v2271
  %v2567 = vunpack.c.l.b16 %v2272
  %v2568 = vunpack.c.l.b16 %v2273
  %v2569 = vunpack.c.l.b16 %v2274
  %v2570 = vunpack.c.l.b16 %v2275
  %v2571 = vunpack.c.l.b16 %v2276
  %v2572 = vunpack.c.l.b16 %v2277
  %v2573 = vunpack.c.l.b16 %v2278
  %v2574 = vunpack.c.l.b16 %v2279
  %v2575 = vunpack.c.l.b16 %v2280
  %v2576 = vunpack.c.l.b16 %v2281
  %v2577 = vunpack.c.l.b16 %v2282
  %v2578 = vunpack.c.l.b16 %v2283
  %v2579 = vunpack.c.l.b16 %v2284
  %v2580 = vunpack.c.l.b16 %v2285
  %v2581 = vunpack.c.l.b16 %v2286
  %v2582 = vunpack.c.l.b16 %v2287
  %v2583 = vunpack.c.l.b16 %v2288
  %v2584 = vunpack.c.l.b16 %v2289
  %v2585 = vunpack.c.l.b16 %v2290
  %v2586 = vunpack.c.l.b16 %v2291
  %v2587 = vunpack.c.l.b16 %v2292
  %v2588 = vunpack.c.l.b16 %v2293
  %v2589 = vunpack.c.l.b16 %v2294
  %v2590 = vunpack.c.l.b16 %v2295
  %v2591 = vunpack.c.l.b16 %v2296
  %v2592 = vunpack.c.l.b16 %v2297
  %v2593 = vunpack.c.l.b16 %v2298
  %v2594 = vunpack.c.l.b16 %v2299
  %v2595 = vunpack.c.l.b16 %v2300
  %v2596 = vunpack.c.l.b16 %v2301
  %v2597 = vunpack.c.l.b16 %v2302
  %v2598 = vunpack.c.l.b16 %v2303
  %v2599 = vunpack.c.l.b16 %v2304
  %v2600 = vunpack.c.l.b16 %v2305
  %v2601 = vunpack.c.l.b16 %v2306
  %v2602 = vunpack.c.l.b16 %v2307
  %v2603 = vunpack.c.l.b16 %v2308
  %v2604 = vunpack.c.l.b16 %v2309
  %v2605 = vunpack.c.l.b16 %v2310
  %v2606 = vunpack.c.l.b16 %v2311
  %v2607 = vunpack.c.l.b16 %v2312
  %v2608 = vunpack.c.l.b16 %v2313
  %v2609 = vunpack.c.l.b16 %v2314
  %v2610 = vunpack.c.l.b16 %v2315
  %v2611 = vunpack.c.l.b16 %v2316
  %v2612 = vunpack.c.l.b16 %v2317
  %v2613 = vunpack.c.l.b16 %v2318
  %v2614 = vunpack.c.l.b16 %v2319
  %v2615 = vunpack.c.l.b16 %v2320
  %v2616 = vpack.c.b16 %v2473, %v2472
  %v2617 = vpack.c.b16 %v2475, %v2474
  %v2618 = vpack.c.b16 %v2477, %v2476
  %v2619 = vpack.c.b16 %v2479, %v2478
  %v2620 = vpack.c.b16 %v2481, %v2480
  %v2621 = vpack.c.b16 %v2483, %v2482
  %v2622 = vpack.c.b16 %v2485, %v2484
  %v2623 = vpack.c.b16 %v2487, %v2486
  %v2624 = vpack.c.b16 %v2489, %v2488
  %v2625 = vpack.c.b16 %v2491, %v2490
  %v2626 = vpack.c.b16 %v2493, %v2492
  %v2627 = vpack.c.b16 %v2495, %v2494
  %v2628 = vpack.c.b16 %v2497, %v2496
  %v2629 = vpack.c.b16 %v2499, %v2498
  %v2630 = vpack.c.b16 %v2501, %v2500
  %v2631 = vpack.c.b16 %v2503, %v2502
  %v2632 = vpack.c.b16 %v2505, %v2504
  %v2633 = vpack.c.b16 %v2507, %v2506
  %v2634 = vpack.c.b16 %v2509, %v2508
  %v2635 = vpack.c.b16 %v2511, %v2510
  %v2636 = vpack.c.b16 %v2513, %v2512
  %v2637 = vpack.c.b16 %v2515, %v2514
  %v2638 = vpack.c.b16 %v2517, %v2516
  %v2639 = vpack.c.b16 %v2519, %v2518
  %v2640 = vpack.c.b16 %v2521, %v2520
  %v2641 = vpack.c.b16 %v2523, %v2522
  %v2642 = vpack.c.b16 %v2525, %v2524
  %v2643 = vpack.c.b16 %v2527, %v2526
  %v2644 = vpack.c.b16 %v2529, %v2528
  %v2645 = vpack.c.b16 %v2531, %v2530
  %v2646 = vpack.c.b16 %v2533, %v2532
  %v2647 = vpack.c.b16 %v2535, %v2534
  %v2648 = vpack.c.b16 %v2537, %v2536
  %v2649 = vpack.c.b16 %v2539, %v2538
  %v2650 = vpack.c.b16 %v2541, %v2540
  %v2651 = vpack.c.b16 %v2543, %v2542
  %v2652 = vpack.c.b16 %v2545, %v2544
  %v2653 = vpack.c.b16 %v2547, %v2546
  %v2654 = vpack.c.b16 %v2549, %v2548
  %v2655 = vpack.c.b16 %v2551, %v2550
  %v2656 = vpack.c.b16 %v2553, %v2552
  %v2657 = vpack.c.b16 %v2555, %v2554
  %v2658 = vpack.c.b16 %v2557, %v2556
  %v2659 = vpack.c.b16 %v2559, %v2558
  %v2660 = vpack.c.b16 %v2561, %v2560
  %v2661 = vpack.c.b16 %v2563, %v2562
  %v2662 = vpack.c.b16 %v2565, %v2564
  %v2663 = vpack.c.b16 %v2567, %v2566
  %v2664 = vpack.c.b16 %v2569, %v2568
  %v2665 = vpack.c.b16 %v2571, %v2570
  %v2666 = vpack.c.b16 %v2573, %v2572
  %v2667 = vpack.c.b16 %v2575, %v2574
  %v2668 = vpack.c.b16 %v2577, %v2576
  %v2669 = vpack.c.b16 %v2579, %v2578
  %v2670 = vpack.c.b16 %v2581, %v2580
  %v2671 = vpack.c.b16 %v2583, %v2582
  %v2672 = vpack.c.b16 %v2585, %v2584
  %v2673 = vpack.c.b16 %v2587, %v2586
  %v2674 = vpack.c.b16 %v2589, %v2588
  %v2675 = vpack.c.b16 %v2591, %v2590
  %v2676 = vpack.c.b16 %v2593, %v2592
  %v2677 = vpack.c.b16 %v2595, %v2594
  %v2678 = vpack.c.b16 %v2597, %v2596
  %v2679 = vpack.c.b16 %v2599, %v2598
  %v2680 = vpack.c.b16 %v2601, %v2600
  %v2681 = vpack.c.b16 %v2603, %v2602
  %v2682 = vpack.c.b16 %v2605, %v2604
  %v2683 = vpack.c.b16 %v2607, %v2606
  %v2684 = vpack.c.b16 %v2609, %v2608
  %v2685 = vpack.c.b16 %v2611, %v2610
  %v2686 = vpack.c.b16 %v2613, %v2612
  %v2687 = vpack.c.b16 %v2615, %v2614
  %2760 = vmatprep.subr.bf16.mxu0 0
  %2761 = vmatpush1.bf16.msra.mxu0 %v2616
  %2762 = vmatprep.subr.bf16.mxu0 0
  %2763 = vmatpush1.bf16.msra.mxu0 %v2617
  %2764 = vmatprep.subr.bf16.mxu0 0
  %2765 = vmatpush1.bf16.msra.mxu0 %v2618
  %2766 = vmatprep.subr.bf16.mxu0 0
  %2767 = vmatpush1.bf16.msra.mxu0 %v2619
  %2768 = vmatprep.subr.bf16.mxu0 0
  %2769 = vmatpush1.bf16.msra.mxu0 %v2620
  %2770 = vmatprep.subr.bf16.mxu0 0
  %2771 = vmatpush1.bf16.msra.mxu0 %v2621
  %2772 = vmatprep.subr.bf16.mxu0 0
  %2773 = vmatpush1.bf16.msra.mxu0 %v2622
  %2774 = vmatprep.subr.bf16.mxu0 0
  %2775 = vmatpush1.bf16.msra.mxu0 %v2623
  %2776 = vmatprep.subr.bf16.mxu0 0
  %2777 = vmatpush1.bf16.msra.mxu0 %v2624
  %2778 = vmatprep.subr.bf16.mxu0 0
  %2779 = vmatpush1.bf16.msra.mxu0 %v2625
  %2780 = vmatprep.subr.bf16.mxu0 0
  %2781 = vmatpush1.bf16.msra.mxu0 %v2626
  %2782 = vmatprep.subr.bf16.mxu0 0
  %2783 = vmatpush1.bf16.msra.mxu0 %v2627
  %2784 = vmatprep.subr.bf16.mxu0 0
  %2785 = vmatpush1.bf16.msra.mxu0 %v2628
  %2786 = vmatprep.subr.bf16.mxu0 0
  %2787 = vmatpush1.bf16.msra.mxu0 %v2629
  %2788 = vmatprep.subr.bf16.mxu0 0
  %2789 = vmatpush1.bf16.msra.mxu0 %v2630
  %2790 = vmatprep.subr.bf16.mxu0 0
  %2791 = vmatpush1.bf16.msra.mxu0 %v2631
  %2792 = vmatprep.mubr.bf16.mxu0 %v2169
  %2793 = vmatmul.mubr.bf16.gmra.mrb[0].mxu0 %v2168
  %v2794 = vpop.f32.mrb[0].mxu0
  %v2795 = vadd.f32 %v2326, %v2794
  %v2796 = vpop.f32.mrb[0].mxu0
  %v2797 = vpop.f32.mrb[0].mxu0
  %v2798 = vpop.f32.mrb[0].mxu0
  %2799 = vdwg.mxu0
  %2800 = vmatprep.subr.bf16.mxu0 0
  %2801 = vmatpush1.bf16.msra.mxu0 %v2632
  %2802 = vmatprep.subr.bf16.mxu0 0
  %2803 = vmatpush1.bf16.msra.mxu0 %v2633
  %2804 = vmatprep.subr.bf16.mxu0 0
  %2805 = vmatpush1.bf16.msra.mxu0 %v2634
  %2806 = vmatprep.subr.bf16.mxu0 0
  %2807 = vmatpush1.bf16.msra.mxu0 %v2635
  %2808 = vmatprep.subr.bf16.mxu0 0
  %2809 = vmatpush1.bf16.msra.mxu0 %v2636
  %2810 = vmatprep.subr.bf16.mxu0 0
  %2811 = vmatpush1.bf16.msra.mxu0 %v2637
  %2812 = vmatprep.subr.bf16.mxu0 0
  %2813 = vmatpush1.bf16.msra.mxu0 %v2638
  %2814 = vmatprep.subr.bf16.mxu0 0
  %2815 = vmatpush1.bf16.msra.mxu0 %v2639
  %2816 = vmatprep.subr.bf16.mxu0 0
  %2817 = vmatpush1.bf16.msra.mxu0 %v2640
  %2818 = vmatprep.subr.bf16.mxu0 0
  %2819 = vmatpush1.bf16.msra.mxu0 %v2641
  %2820 = vmatprep.subr.bf16.mxu0 0
  %2821 = vmatpush1.bf16.msra.mxu0 %v2642
  %2822 = vmatprep.subr.bf16.mxu0 0
  %2823 = vmatpush1.bf16.msra.mxu0 %v2643
  %2824 = vmatprep.subr.bf16.mxu0 0
  %2825 = vmatpush1.bf16.msra.mxu0 %v2644
  %2826 = vmatprep.subr.bf16.mxu0 0
  %2827 = vmatpush1.bf16.msra.mxu0 %v2645
  %2828 = vmatprep.subr.bf16.mxu0 0
  %2829 = vmatpush1.bf16.msra.mxu0 %v2646
  %2830 = vmatprep.subr.bf16.mxu0 0
  %2831 = vmatpush1.bf16.msra.mxu0 %v2647
  %2832 = vmatprep.mubr.bf16.mxu0 %v2171
  %2833 = vmatmul.mubr.bf16.gmra.mrb[0].mxu0 %v2170
  %v2834 = vpop.f32.mrb[0].mxu0
  %v2835 = vadd.f32 %v2795, %v2834
  %v2836 = vpop.f32.mrb[0].mxu0
  %v2837 = vpop.f32.mrb[0].mxu0
  %v2838 = vpop.f32.mrb[0].mxu0
  %2839 = vdwg.mxu0
  %2840 = vmatprep.subr.bf16.mxu0 0
  %2841 = vmatpush1.bf16.msra.mxu0 %v2648
  %2842 = vmatprep.subr.bf16.mxu0 0
  %2843 = vmatpush1.bf16.msra.mxu0 %v2649
  %2844 = vmatprep.subr.bf16.mxu0 0
  %2845 = vmatpush1.bf16.msra.mxu0 %v2650
  %2846 = vmatprep.subr.bf16.mxu0 0
  %2847 = vmatpush1.bf16.msra.mxu0 %v2651
  %2848 = vmatprep.subr.bf16.mxu0 0
  %2849 = vmatpush1.bf16.msra.mxu0 %v2652
  %2850 = vmatprep.subr.bf16.mxu0 0
  %2851 = vmatpush1.bf16.msra.mxu0 %v2653
  %2852 = vmatprep.subr.bf16.mxu0 0
  %2853 = vmatpush1.bf16.msra.mxu0 %v2654
  %2854 = vmatprep.subr.bf16.mxu0 0
  %2855 = vmatpush1.bf16.msra.mxu0 %v2655
  %2856 = vmatprep.subr.bf16.mxu0 0
  %2857 = vmatpush1.bf16.msra.mxu0 %v2656
  %2858 = vmatprep.subr.bf16.mxu0 0
  %2859 = vmatpush1.bf16.msra.mxu0 %v2657
  %2860 = vmatprep.subr.bf16.mxu0 0
  %2861 = vmatpush1.bf16.msra.mxu0 %v2658
  %2862 = vmatprep.subr.bf16.mxu0 0
  %2863 = vmatpush1.bf16.msra.mxu0 %v2659
  %2864 = vmatprep.subr.bf16.mxu0 0
  %2865 = vmatpush1.bf16.msra.mxu0 %v2660
  %2866 = vmatprep.subr.bf16.mxu0 0
  %2867 = vmatpush1.bf16.msra.mxu0 %v2661
  %2868 = vmatprep.subr.bf16.mxu0 0
  %2869 = vmatpush1.bf16.msra.mxu0 %v2662
  %2870 = vmatprep.subr.bf16.mxu0 0
  %2871 = vmatpush1.bf16.msra.mxu0 %v2663
  %2872 = vmatprep.mubr.bf16.mxu0 %v2173
  %2873 = vmatmul.mubr.bf16.gmra.mrb[0].mxu0 %v2172
  %v2874 = vpop.f32.mrb[0].mxu0
  %v2875 = vadd.f32 %v2835, %v2874
  %v2876 = vpop.f32.mrb[0].mxu0
  %v2877 = vpop.f32.mrb[0].mxu0
  %v2878 = vpop.f32.mrb[0].mxu0
  %2879 = vdwg.mxu0
  %2880 = vmatprep.subr.bf16.mxu0 0
  %2881 = vmatpush1.bf16.msra.mxu0 %v2664
  %2882 = vmatprep.subr.bf16.mxu0 0
  %2883 = vmatpush1.bf16.msra.mxu0 %v2665
  %2884 = vmatprep.subr.bf16.mxu0 0
  %2885 = vmatpush1.bf16.msra.mxu0 %v2666
  %2886 = vmatprep.subr.bf16.mxu0 0
  %2887 = vmatpush1.bf16.msra.mxu0 %v2667
  %2888 = vmatprep.subr.bf16.mxu0 0
  %2889 = vmatpush1.bf16.msra.mxu0 %v2668
  %2890 = vmatprep.subr.bf16.mxu0 0
  %2891 = vmatpush1.bf16.msra.mxu0 %v2669
  %2892 = vmatprep.subr.bf16.mxu0 0
  %2893 = vmatpush1.bf16.msra.mxu0 %v2670
  %2894 = vmatprep.subr.bf16.mxu0 0
  %2895 = vmatpush1.bf16.msra.mxu0 %v2671
  %2896 = vmatprep.subr.bf16.mxu0 0
  %2897 = vmatpush1.bf16.msra.mxu0 %v2672
  %2898 = vmatprep.subr.bf16.mxu0 0
  %2899 = vmatpush1.bf16.msra.mxu0 %v2673
  %2900 = vmatprep.subr.bf16.mxu0 0
  %2901 = vmatpush1.bf16.msra.mxu0 %v2674
  %2902 = vmatprep.subr.bf16.mxu0 0
  %2903 = vmatpush1.bf16.msra.mxu0 %v2675
  %2904 = vmatprep.subr.bf16.mxu0 0
  %2905 = vmatpush1.bf16.msra.mxu0 %v2676
  %2906 = vmatprep.subr.bf16.mxu0 0
  %2907 = vmatpush1.bf16.msra.mxu0 %v2677
  %2908 = vmatprep.subr.bf16.mxu0 0
  %2909 = vmatpush1.bf16.msra.mxu0 %v2678
  %2910 = vmatprep.subr.bf16.mxu0 0
  %2911 = vmatpush1.bf16.msra.mxu0 %v2679
  %2912 = vmatprep.mubr.bf16.mxu0 %v2175
  %2913 = vmatmul.mubr.bf16.gmra.mrb[0].mxu0 %v2174
  %v2914 = vpop.f32.mrb[0].mxu0
  %v2915 = vadd.f32 %v2875, %v2914
  %v2916 = vpop.f32.mrb[0].mxu0
  %v2917 = vpop.f32.mrb[0].mxu0
  %v2918 = vpop.f32.mrb[0].mxu0
  %2919 = vdwg.mxu0
  %2920 = vmatprep.subr.bf16.mxu0 0
  %2921 = vmatpush1.bf16.msra.mxu0 %v2680
  %2922 = vmatprep.subr.bf16.mxu0 0
  %2923 = vmatpush1.bf16.msra.mxu0 %v2681
  %2924 = vmatprep.subr.bf16.mxu0 0
  %2925 = vmatpush1.bf16.msra.mxu0 %v2682
  %2926 = vmatprep.subr.bf16.mxu0 0
  %2927 = vmatpush1.bf16.msra.mxu0 %v2683
  %2928 = vmatprep.subr.bf16.mxu0 0
  %2929 = vmatpush1.bf16.msra.mxu0 %v2684
  %2930 = vmatprep.subr.bf16.mxu0 0
  %2931 = vmatpush1.bf16.msra.mxu0 %v2685
  %2932 = vmatprep.subr.bf16.mxu0 0
  %2933 = vmatpush1.bf16.msra.mxu0 %v2686
  %2934 = vmatprep.subr.bf16.mxu0 0
  %2935 = vmatpush1.bf16.msra.mxu0 %v2687
  %2936 = vmatprep.subr.bf16.mxu0 0
  %2937 = vmatpush1.bf16.msra.mxu0 0
  %2938 = vmatprep.subr.bf16.mxu0 0
  %2939 = vmatpush1.bf16.msra.mxu0 0
  %2940 = vmatprep.subr.bf16.mxu0 0
  %2941 = vmatpush1.bf16.msra.mxu0 0
  %2942 = vmatprep.subr.bf16.mxu0 0
  %2943 = vmatpush1.bf16.msra.mxu0 0
  %2944 = vmatprep.subr.bf16.mxu0 0
  %2945 = vmatpush1.bf16.msra.mxu0 0
  %2946 = vmatprep.subr.bf16.mxu0 0
  %2947 = vmatpush1.bf16.msra.mxu0 0
  %2948 = vmatprep.subr.bf16.mxu0 0
  %2949 = vmatpush1.bf16.msra.mxu0 0
  %2950 = vmatprep.subr.bf16.mxu0 0
  %2951 = vmatpush1.bf16.msra.mxu0 0
  %2952 = vmatprep.mubr.bf16.mxu0 0
  %2953 = vmatmul.mubr.bf16.gmra.mrb[0].mxu0 %v2176
  %v2954 = vpop.f32.mrb[0].mxu0
  %v2955 = vadd.f32 %v2915, %v2954
  %v2956 = vpop.f32.mrb[0].mxu0
  %v2957 = vpop.f32.mrb[0].mxu0
  %v2958 = vpop.f32.mrb[0].mxu0
  %2959 = vdwg.mxu0
  %v2960 = vmax.f32 %v2955, 0.0
  %v2961 = vpack.c.bf16 %v2960, %v2960
  %v2962 = vld [vmem:[%s7] sm:$0xf]
  %v2963 = vld [vmem:[%s7 + $0x4] sm:$0xf]
  %v2964 = vld [vmem:[%s7 + $0x8] sm:$0xf]
  %v2965 = vld [vmem:[%s7 + $0xc] sm:$0xf]
  %v2966 = vld [vmem:[%s7 + $0x10] sm:$0xf]
  %v2967 = vld [vmem:[%s7 + $0x14] sm:$0xf]
  %v2968 = vld [vmem:[%s7 + $0x18] sm:$0xf]
  %v2969 = vld [vmem:[%s7 + $0x1c] sm:$0xf]
  %v2970 = vld [vmem:[%s7 + $0x20] sm:$0xf]
  %v2971 = vld [vmem:[%s7 + $0x24] sm:$0xf]
  %v2972 = vld [vmem:[%s7 + $0x28] sm:$0xf]
  %v2973 = vld [vmem:[%s7 + $0x2c] sm:$0xf]
  %v2974 = vld [vmem:[%s7 + $0x30] sm:$0xf]
  %v2975 = vld [vmem:[%s7 + $0x34] sm:$0xf]
  %v2976 = vld [vmem:[%s7 + $0x38] sm:$0xf]
  %v2977 = vld [vmem:[%s7 + $0x3c] sm:$0xf]
  %v2978 = vld [vmem:[%s8] sm:$0x1]
  %v2980 = vlaneseq
  %v2981 = vshrl.u32 %v2980, 7
  %v2982 = vsub.s32 0, %v2981
  %v2983 = vrot.slane %v2978, %v2982
  %v3001 = vunpack.c.l.b16 %v2962
  %v3002 = vunpack.c.l.b16 %v2963
  %v3003 = vunpack.c.l.b16 %v2964
  %v3004 = vunpack.c.l.b16 %v2965
  %v3005 = vunpack.c.l.b16 %v2966
  %v3006 = vunpack.c.l.b16 %v2967
  %v3007 = vunpack.c.l.b16 %v2968
  %v3008 = vunpack.c.l.b16 %v2969
  %v3009 = vunpack.c.l.b16 %v2970
  %v3010 = vunpack.c.l.b16 %v2971
  %v3011 = vunpack.c.l.b16 %v2972
  %v3012 = vunpack.c.l.b16 %v2973
  %v3013 = vunpack.c.l.b16 %v2974
  %v3014 = vunpack.c.l.b16 %v2975
  %v3015 = vunpack.c.l.b16 %v2976
  %v3016 = vunpack.c.l.b16 %v2977
  %v3017 = vpack.c.b16 %v3002, %v3001
  %v3018 = vpack.c.b16 %v3004, %v3003
  %v3019 = vpack.c.b16 %v3006, %v3005
  %v3020 = vpack.c.b16 %v3008, %v3007
  %v3021 = vpack.c.b16 %v3010, %v3009
  %v3022 = vpack.c.b16 %v3012, %v3011
  %v3023 = vpack.c.b16 %v3014, %v3013
  %v3024 = vpack.c.b16 %v3016, %v3015
  %3033 = vmatprep.subr.bf16.mxu0 0
  %3034 = vmatpush1.bf16.msra.mxu0 %v3017
  %3035 = vmatprep.subr.bf16.mxu0 0
  %3036 = vmatpush1.bf16.msra.mxu0 %v3018
  %3037 = vmatprep.subr.bf16.mxu0 0
  %3038 = vmatpush1.bf16.msra.mxu0 %v3019
  %3039 = vmatprep.subr.bf16.mxu0 0
  %3040 = vmatpush1.bf16.msra.mxu0 %v3020
  %3041 = vmatprep.subr.bf16.mxu0 0
  %3042 = vmatpush1.bf16.msra.mxu0 %v3021
  %3043 = vmatprep.subr.bf16.mxu0 0
  %3044 = vmatpush1.bf16.msra.mxu0 %v3022
  %3045 = vmatprep.subr.bf16.mxu0 0
  %3046 = vmatpush1.bf16.msra.mxu0 %v3023
  %3047 = vmatprep.subr.bf16.mxu0 0
  %3048 = vmatpush1.bf16.msra.mxu0 %v3024
  %3049 = vmatprep.subr.bf16.mxu0 0
  %3050 = vmatpush1.bf16.msra.mxu0 0
  %3051 = vmatprep.subr.bf16.mxu0 0
  %3052 = vmatpush1.bf16.msra.mxu0 0
  %3053 = vmatprep.subr.bf16.mxu0 0
  %3054 = vmatpush1.bf16.msra.mxu0 0
  %3055 = vmatprep.subr.bf16.mxu0 0
  %3056 = vmatpush1.bf16.msra.mxu0 0
  %3057 = vmatprep.subr.bf16.mxu0 0
  %3058 = vmatpush1.bf16.msra.mxu0 0
  %3059 = vmatprep.subr.bf16.mxu0 0
  %3060 = vmatpush1.bf16.msra.mxu0 0
  %3061 = vmatprep.subr.bf16.mxu0 0
  %3062 = vmatpush1.bf16.msra.mxu0 0
  %3063 = vmatprep.subr.bf16.mxu0 0
  %3064 = vmatpush1.bf16.msra.mxu0 0
  %3065 = vmatprep.mubr.bf16.mxu0 0
  %3066 = vmatmul.mubr.bf16.gmra.mrb[0].mxu0 %v2961
  %v3067 = vpop.f32.mrb[0].mxu0
  %v3068 = vadd.f32 %v2983, %v3067
  %v3069 = vpop.f32.mrb[0].mxu0
  %v3070 = vpop.f32.mrb[0].mxu0
  %v3071 = vpop.f32.mrb[0].mxu0
  %3072 = vdwg.mxu0
  %v3073 = vpack.c.bf16 %v3068, %v3068
  %v3074 = vld [vmem:[%s9] sm:$0xf]
  %v3075 = vld [vmem:[%s9 + $0x4] sm:$0xf]
  %v3076 = vld [vmem:[%s9 + $0x8] sm:$0xf]
  %v3077 = vld [vmem:[%s9 + $0xc] sm:$0xf]
  %v3078 = vld [vmem:[%s9 + $0x10] sm:$0xf]
  %v3079 = vld [vmem:[%s9 + $0x14] sm:$0xf]
  %v3080 = vld [vmem:[%s9 + $0x18] sm:$0xf]
  %v3081 = vld [vmem:[%s9 + $0x1c] sm:$0xf]
  %v3082 = vld [vmem:[%s9 + $0x20] sm:$0xf]
  %v3083 = vld [vmem:[%s9 + $0x24] sm:$0xf]
  %v3084 = vld [vmem:[%s9 + $0x28] sm:$0xf]
  %v3085 = vld [vmem:[%s9 + $0x2c] sm:$0xf]
  %v3086 = vld [vmem:[%s9 + $0x30] sm:$0xf]
  %v3087 = vld [vmem:[%s9 + $0x34] sm:$0xf]
  %v3088 = vld [vmem:[%s9 + $0x38] sm:$0xf]
  %v3089 = vld [vmem:[%s9 + $0x3c] sm:$0xf]
  %v3090 = vld [vmem:[%s10] sm:$0x1]
  %v3092 = vlaneseq
  %v3093 = vshrl.u32 %v3092, 7
  %v3094 = vsub.s32 0, %v3093
  %v3095 = vrot.slane %v3090, %v3094
  %v3113 = vunpack.c.l.b16 %v3074
  %v3114 = vunpack.c.l.b16 %v3075
  %v3115 = vunpack.c.l.b16 %v3076
  %v3116 = vunpack.c.l.b16 %v3077
  %v3117 = vunpack.c.l.b16 %v3078
  %v3118 = vunpack.c.l.b16 %v3079
  %v3119 = vunpack.c.l.b16 %v3080
  %v3120 = vunpack.c.l.b16 %v3081
  %v3121 = vunpack.c.l.b16 %v3082
  %v3122 = vunpack.c.l.b16 %v3083
  %v3123 = vunpack.c.l.b16 %v3084
  %v3124 = vunpack.c.l.b16 %v3085
  %v3125 = vunpack.c.l.b16 %v3086
  %v3126 = vunpack.c.l.b16 %v3087
  %v3127 = vunpack.c.l.b16 %v3088
  %v3128 = vunpack.c.l.b16 %v3089
  %v3129 = vpack.c.b16 %v3114, %v3113
  %v3130 = vpack.c.b16 %v3116, %v3115
  %v3131 = vpack.c.b16 %v3118, %v3117
  %v3132 = vpack.c.b16 %v3120, %v3119
  %v3133 = vpack.c.b16 %v3122, %v3121
  %v3134 = vpack.c.b16 %v3124, %v3123
  %v3135 = vpack.c.b16 %v3126, %v3125
  %v3136 = vpack.c.b16 %v3128, %v3127
  %3145 = vmatprep.subr.bf16.mxu0 0
  %3146 = vmatpush1.bf16.msra.mxu0 %v3129
  %3147 = vmatprep.subr.bf16.mxu0 0
  %3148 = vmatpush1.bf16.msra.mxu0 %v3130
  %3149 = vmatprep.subr.bf16.mxu0 0
  %3150 = vmatpush1.bf16.msra.mxu0 %v3131
  %3151 = vmatprep.subr.bf16.mxu0 0
  %3152 = vmatpush1.bf16.msra.mxu0 %v3132
  %3153 = vmatprep.subr.bf16.mxu0 0
  %3154 = vmatpush1.bf16.msra.mxu0 %v3133
  %3155 = vmatprep.subr.bf16.mxu0 0
  %3156 = vmatpush1.bf16.msra.mxu0 %v3134
  %3157 = vmatprep.subr.bf16.mxu0 0
  %3158 = vmatpush1.bf16.msra.mxu0 %v3135
  %3159 = vmatprep.subr.bf16.mxu0 0
  %3160 = vmatpush1.bf16.msra.mxu0 %v3136
  %3161 = vmatprep.subr.bf16.mxu0 0
  %3162 = vmatpush1.bf16.msra.mxu0 0
  %3163 = vmatprep.subr.bf16.mxu0 0
  %3164 = vmatpush1.bf16.msra.mxu0 0
  %3165 = vmatprep.subr.bf16.mxu0 0
  %3166 = vmatpush1.bf16.msra.mxu0 0
  %3167 = vmatprep.subr.bf16.mxu0 0
  %3168 = vmatpush1.bf16.msra.mxu0 0
  %3169 = vmatprep.subr.bf16.mxu0 0
  %3170 = vmatpush1.bf16.msra.mxu0 0
  %3171 = vmatprep.subr.bf16.mxu0 0
  %3172 = vmatpush1.bf16.msra.mxu0 0
  %3173 = vmatprep.subr.bf16.mxu0 0
  %3174 = vmatpush1.bf16.msra.mxu0 0
  %3175 = vmatprep.subr.bf16.mxu0 0
  %3176 = vmatpush1.bf16.msra.mxu0 0
  %3177 = vmatprep.mubr.bf16.mxu0 0
  %3178 = vmatmul.mubr.bf16.gmra.mrb[0].mxu0 %v3073
  %v3179 = vpop.f32.mrb[0].mxu0
  %v3180 = vadd.f32 %v3095, %v3179
  %v3181 = vpop.f32.mrb[0].mxu0
  %v3182 = vpop.f32.mrb[0].mxu0
  %v3183 = vpop.f32.mrb[0].mxu0
  %3184 = vdwg.mxu0
  %v3185 = vmax.f32 %v3180, 0.0
  %v3186 = vpack.c.bf16 %v3185, %v3185
  %v3187 = vld [vmem:[%s11] sm:$0xf]
  %v3188 = vld [vmem:[%s11 + $0x4] sm:$0xf]
  %v3189 = vld [vmem:[%s11 + $0x8] sm:$0xf]
  %v3190 = vld [vmem:[%s11 + $0xc] sm:$0xf]
  %v3191 = vld [vmem:[%s11 + $0x10] sm:$0xf]
  %v3192 = vld [vmem:[%s11 + $0x14] sm:$0xf]
  %v3193 = vld [vmem:[%s11 + $0x18] sm:$0xf]
  %v3194 = vld [vmem:[%s11 + $0x1c] sm:$0xf]
  %v3195 = vld [vmem:[%s11 + $0x20] sm:$0xf]
  %v3196 = vld [vmem:[%s11 + $0x24] sm:$0xf]
  %v3197 = vld [vmem:[%s11 + $0x28] sm:$0xf]
  %v3198 = vld [vmem:[%s11 + $0x2c] sm:$0xf]
  %v3199 = vld [vmem:[%s11 + $0x30] sm:$0xf]
  %v3200 = vld [vmem:[%s11 + $0x34] sm:$0xf]
  %v3201 = vld [vmem:[%s11 + $0x38] sm:$0xf]
  %v3202 = vld [vmem:[%s11 + $0x3c] sm:$0xf]
  %v3203 = vld [vmem:[%s12] sm:$0x1]
  %v3205 = vlaneseq
  %v3206 = vshrl.u32 %v3205, 7
  %v3207 = vsub.s32 0, %v3206
  %v3208 = vrot.slane %v3203, %v3207
  %v3226 = vunpack.c.l.b16 %v3187
  %v3227 = vunpack.c.l.b16 %v3188
  %v3228 = vunpack.c.l.b16 %v3189
  %v3229 = vunpack.c.l.b16 %v3190
  %v3230 = vunpack.c.l.b16 %v3191
  %v3231 = vunpack.c.l.b16 %v3192
  %v3232 = vunpack.c.l.b16 %v3193
  %v3233 = vunpack.c.l.b16 %v3194
  %v3234 = vunpack.c.l.b16 %v3195
  %v3235 = vunpack.c.l.b16 %v3196
  %v3236 = vunpack.c.l.b16 %v3197
  %v3237 = vunpack.c.l.b16 %v3198
  %v3238 = vunpack.c.l.b16 %v3199
  %v3239 = vunpack.c.l.b16 %v3200
  %v3240 = vunpack.c.l.b16 %v3201
  %v3241 = vunpack.c.l.b16 %v3202
  %v3242 = vpack.c.b16 %v3227, %v3226
  %v3243 = vpack.c.b16 %v3229, %v3228
  %v3244 = vpack.c.b16 %v3231, %v3230
  %v3245 = vpack.c.b16 %v3233, %v3232
  %v3246 = vpack.c.b16 %v3235, %v3234
  %v3247 = vpack.c.b16 %v3237, %v3236
  %v3248 = vpack.c.b16 %v3239, %v3238
  %v3249 = vpack.c.b16 %v3241, %v3240
  %3258 = vmatprep.subr.bf16.mxu0 0
  %3259 = vmatpush1.bf16.msra.mxu0 %v3242
  %3260 = vmatprep.subr.bf16.mxu0 0
  %3261 = vmatpush1.bf16.msra.mxu0 %v3243
  %3262 = vmatprep.subr.bf16.mxu0 0
  %3263 = vmatpush1.bf16.msra.mxu0 %v3244
  %3264 = vmatprep.subr.bf16.mxu0 0
  %3265 = vmatpush1.bf16.msra.mxu0 %v3245
  %3266 = vmatprep.subr.bf16.mxu0 0
  %3267 = vmatpush1.bf16.msra.mxu0 %v3246
  %3268 = vmatprep.subr.bf16.mxu0 0
  %3269 = vmatpush1.bf16.msra.mxu0 %v3247
  %3270 = vmatprep.subr.bf16.mxu0 0
  %3271 = vmatpush1.bf16.msra.mxu0 %v3248
  %3272 = vmatprep.subr.bf16.mxu0 0
  %3273 = vmatpush1.bf16.msra.mxu0 %v3249
  %3274 = vmatprep.subr.bf16.mxu0 0
  %3275 = vmatpush1.bf16.msra.mxu0 0
  %3276 = vmatprep.subr.bf16.mxu0 0
  %3277 = vmatpush1.bf16.msra.mxu0 0
  %3278 = vmatprep.subr.bf16.mxu0 0
  %3279 = vmatpush1.bf16.msra.mxu0 0
  %3280 = vmatprep.subr.bf16.mxu0 0
  %3281 = vmatpush1.bf16.msra.mxu0 0
  %3282 = vmatprep.subr.bf16.mxu0 0
  %3283 = vmatpush1.bf16.msra.mxu0 0
  %3284 = vmatprep.subr.bf16.mxu0 0
  %3285 = vmatpush1.bf16.msra.mxu0 0
  %3286 = vmatprep.subr.bf16.mxu0 0
  %3287 = vmatpush1.bf16.msra.mxu0 0
  %3288 = vmatprep.subr.bf16.mxu0 0
  %3289 = vmatpush1.bf16.msra.mxu0 0
  %3290 = vmatprep.mubr.bf16.mxu0 0
  %3291 = vmatmul.mubr.bf16.gmra.mrb[0].mxu0 %v3186
  %v3292 = vpop.f32.mrb[0].mxu0
  %v3293 = vadd.f32 %v3208, %v3292
  %v3294 = vpop.f32.mrb[0].mxu0
  %v3295 = vpop.f32.mrb[0].mxu0
  %v3296 = vpop.f32.mrb[0].mxu0
  %3297 = vdwg.mxu0
  %3298 = vst [vmem:[%s13] sm:$0xff] %v3293
  // Predicated region
  $region54: #{critic_forward.1} parent=0 // pred_check
    _
  $region55: #{critic_forward.1} parent=0 // pred_check_branch
    %3300 = sbr.rel (0) target = $region57
  $region56: #{critic_forward.1} parent=0 // pred_region
    _
  $region57: #{critic_forward.1} parent=0 // pred_fallthru
    _
  // Predicated region
  $region58: #{critic_forward.1} parent=0 // pred_check
    _
  $region59: #{critic_forward.1} parent=0 // pred_check_branch
    %3302 = sbr.rel (0) target = $region61
  $region60: #{critic_forward.1} parent=0 // pred_region
    _
  $region61: #{critic_forward.1} parent=0 // pred_fallthru
    _

</llo_original>
